<compile_context>
chip_gen: v6e
topology: v6e:2x2x1
jax: 0.10.0
libtpu: 0.0.40
codegen_flags: <defaults>
</compile_context>

<pallas_src>
import functools

import jax
import jax.numpy as jnp
from jax.experimental import pallas as pl
from jax.experimental.pallas import tpu as pltpu


def _round_up(x, m):
    return (x + m - 1) // m * m


# ---------------------------------------------------------------------------
# Pallas kernel: one-hot (emb folded into weights) + fused gated CNN + MLP head
# ---------------------------------------------------------------------------
def _attacker_dqn_kernel(T, Vp, max_ks, K, nb,
                         tok_ref, w_ref, b_ref, mask_ref,
                         wfc1_ref, bfc1_ref, wfc2_ref, bfc2_ref,
                         q_ref, oh_ref):
    Bb, Ltp = tok_ref.shape
    nbK = nb * K

    # ---- one-hot over the (padded) vocabulary, staged through VMEM scratch -----------
    # Tokens outside [0, V) silently map to a zero row (nn.Embedding would raise instead).
    tok = tok_ref[...]                                                  # (Bb, Ltp) int32
    v_ids = jax.lax.broadcasted_iota(jnp.int32, (Bb, Ltp, Vp), 2)
    oh_ref[...] = (tok[:, :, None] == v_ids).astype(jnp.bfloat16)      # (Bb, Ltp, Vp)

    # ---- im2col from ref slices: (Bb*T, max_ks*Vp) bf16, lane-dense (= 128 lanes) ----
    cols = [oh_ref[:, tau:tau + T, :].reshape(Bb * T, Vp) for tau in range(max_ks)]
    xu = jnp.concatenate(cols, axis=-1)

    # ---- ONE fused matmul: embedding∘(conv||gate) for all branches (2*nb*K lanes) ----
    y = jnp.dot(xu, w_ref[...], preferred_element_type=jnp.float32) + b_ref[...]
    g = y[:, :nbK] * jax.nn.sigmoid(y[:, nbK:])                         # (Bb*T, nbK) f32

    # hoisted additive mask: -inf where (t, branch-lane) is outside that branch's l_out
    g = g.reshape(Bb, T, nbK) + mask_ref[...]
    gmax = jnp.max(g, axis=1)                                           # (Bb, nbK)

    # max_pool1d over the concatenated time axis == max over the per-branch maxes
    pooled = gmax[:, :K]
    for i in range(1, nb):
        pooled = jnp.maximum(pooled, gmax[:, i * K:(i + 1) * K])        # (Bb, K)

    # ---- lane-dense MLP head: fc1 + ReLU, fc2 (both padded to 128 output lanes) ------
    h = jnp.dot(pooled.astype(jnp.bfloat16), wfc1_ref[...],
                preferred_element_type=jnp.float32) + bfc1_ref[...]
    h = jnp.maximum(h, 0.0)
    q = jnp.dot(h.astype(jnp.bfloat16), wfc2_ref[...],
                preferred_element_type=jnp.float32) + bfc2_ref[...]
    q_ref[...] = q.astype(q_ref.dtype)


# ---------------------------------------------------------------------------
# Wrapper: weight fusion / embedding folding, padding, grid setup
# ---------------------------------------------------------------------------
def attacker_ma_dqn_forward(tokens, params, kernel_sizes=(3, 8), batch_block=None):
    tokens = jnp.asarray(tokens, jnp.int32)
    B, L = tokens.shape
    emb = jnp.asarray(params['embedding'], jnp.float32)
    V, E = emb.shape
    K = params['wc'][0].shape[-1]
    H = params['wfc1'].shape[-1]
    A = params['wfc2'].shape[-1]
    nb = len(kernel_sizes)

    max_ks, min_ks = max(kernel_sizes), min(kernel_sizes)
    # PyTorch conv would fail for L < max_ks; the -inf mask would otherwise poison the pool.
    assert L >= max_ks, "sequence length must be >= max(kernel_sizes)"
    l_outs = [L - k + 1 for k in kernel_sizes]
    T = _round_up(L - min_ks + 1, 8)          # padded output rows per sample
    Ltp = _round_up(T + max_ks - 1, 8)        # padded time length so every tap is in range
    Vp = _round_up(V, 8)                      # padded vocab (folded contraction = max_ks*Vp)

    # ---- fold embedding into the fused (both branches) conv||gate weights ------------
    # TODO(synk): for large vocabularies (V >~ 512) keep a separate one-hot/embedding
    # matmul (or a DMA gather) instead of folding emb into the conv weights.
    emb_p = jnp.zeros((Vp, E), jnp.float32).at[:V].set(emb)
    w_all = jnp.zeros((max_ks, E, 2 * nb * K), jnp.float32)
    for i, ks in enumerate(kernel_sizes):
        wc = jnp.asarray(params['wc'][i], jnp.float32)        # (ks, E, K)
        wg = jnp.asarray(params['wg'][i], jnp.float32)
        w_all = w_all.at[:ks, :, i * K:(i + 1) * K].set(wc)                       # conv_i
        w_all = w_all.at[:ks, :, nb * K + i * K:nb * K + (i + 1) * K].set(wg)     # gate_i
    b_all = jnp.concatenate(
        [jnp.asarray(params['bc'][i], jnp.float32) for i in range(nb)]
        + [jnp.asarray(params['bg'][i], jnp.float32) for i in range(nb)], axis=1)  # (1, 2nbK)
    w_eff = jnp.einsum('ve,tek->tvk', emb_p, w_all)
    w_eff = w_eff.reshape(max_ks * Vp, 2 * nb * K).astype(jnp.bfloat16)            # (128, 256)

    # ---- hoisted additive time/branch mask (0 valid, -inf padded rows) ---------------
    lane_lim = jnp.repeat(jnp.asarray(l_outs, jnp.int32), K)                       # (nb*K,)
    mask_add = jnp.where(jnp.arange(T)[:, None] < lane_lim[None, :],
                         0.0, -jnp.inf).astype(jnp.float32)                        # (T, nbK)

    # ---- lane-dense MLP head (pad fc1 cols, fc2 rows/cols to 128 lanes) ---------------
    Hp = _round_up(H, 128)
    Np = _round_up(A, 128)
    wfc1p = jnp.zeros((K, Hp), jnp.float32).at[:, :H].set(params['wfc1']).astype(jnp.bfloat16)
    bfc1p = jnp.zeros((1, Hp), jnp.float32).at[:, :H].set(params['bfc1'])
    wfc2p = jnp.zeros((Hp, Np), jnp.float32).at[:H, :A].set(params['wfc2']).astype(jnp.bfloat16)
    bfc2p = jnp.zeros((1, Np), jnp.float32).at[:, :A].set(params['bfc2'])

    # ---- batch grid: >= 2 blocks when B allows (v7x has 2 TCs), capped for VMEM -------
    if batch_block is None:
        batch_block = max(8, min(256, _round_up(-(-B // 2), 8)))
    B_pad = _round_up(B, batch_block)
    n_blocks = B_pad // batch_block

    # zero-pad tokens in batch and time (token 0 is padding_idx -> zero folded row)
    tok_p = jnp.zeros((B_pad, Ltp), jnp.int32).at[:B, :L].set(tokens)

    kern = functools.partial(_attacker_dqn_kernel, T, Vp, max_ks, K, nb)
    rep = lambda i: (0, 0)   # weights / mask: same block every grid step

    q_pad = pl.pallas_call(
        kern,
        out_shape=jax.ShapeDtypeStruct((B_pad, Np), jnp.float32),
        grid=(n_blocks,),
        in_specs=[
            pl.BlockSpec((batch_block, Ltp), lambda i: (i, 0)),   # tokens
            pl.BlockSpec((max_ks * Vp, 2 * nb * K), rep),         # folded conv||gate (both branches)
            pl.BlockSpec((1, 2 * nb * K), rep),                   # fused bias
            pl.BlockSpec((T, nb * K), rep),                       # time/branch mask
            pl.BlockSpec((K, Hp), rep),                           # fc1 (lane-padded)
            pl.BlockSpec((1, Hp), rep),
            pl.BlockSpec((Hp, Np), rep),                          # fc2 (lane-padded)
            pl.BlockSpec((1, Np), rep),
        ],
        out_specs=pl.BlockSpec((batch_block, Np), lambda i: (i, 0)),
        scratch_shapes=[pltpu.VMEM((batch_block, Ltp, Vp), jnp.bfloat16)],
        compiler_params=pltpu.CompilerParams(
            dimension_semantics=("parallel",),
            vmem_limit_bytes=48 * 1024 * 1024),
    )(tok_p, w_eff, b_all, mask_add, wfc1p, bfc1p, wfc2p, bfc2p)

    return q_pad[:B, :A]


# ---------------------------------------------------------------------------
# Deterministic parameter init (shapes from Attacker_MA_DQN.__init__ defaults)
# ---------------------------------------------------------------------------
def init_params(key, num_nodes, embedding_size=32, num_kernels=64,
                kernel_sizes=(3, 8), relevant_v_size=64, max_actions=8):
    keys = jax.random.split(key, 16)
    emb = jax.random.normal(keys[0], (num_nodes + 1, embedding_size), jnp.float32) * 0.1
    emb = emb.at[0].set(0.0)                                  # padding_idx=0
    wc, bc, wg, bg = [], [], [], []
    for i, ks in enumerate(kernel_sizes):
        # PyTorch Conv1d weight is (K, E, ks); stored here as (ks, E, K) for matmul use.
        wc.append(jax.random.normal(keys[1 + i], (ks, embedding_size, num_kernels), jnp.float32) * 0.05)
        bc.append(jax.random.normal(keys[3 + i], (1, num_kernels), jnp.float32) * 0.05)
        wg.append(jax.random.normal(keys[5 + i], (ks, embedding_size, num_kernels), jnp.float32) * 0.05)
        bg.append(jax.random.normal(keys[7 + i], (1, num_kernels), jnp.float32) * 0.05)
    wfc1 = jax.random.normal(keys[9], (num_kernels, relevant_v_size), jnp.float32) * 0.05
    bfc1 = jax.random.normal(keys[10], (1, relevant_v_size), jnp.float32) * 0.05
    wfc2 = jax.random.normal(keys[11], (relevant_v_size, max_actions), jnp.float32) * 0.05
    bfc2 = jax.random.normal(keys[12], (1, max_actions), jnp.float32) * 0.05
    return dict(embedding=emb, wc=wc, bc=bc, wg=wg, bg=bg,
                wfc1=wfc1, bfc1=bfc1, wfc2=wfc2, bfc2=bfc2)


# ---------------------------------------------------------------------------
# Pure-JAX f32 reference (same semantics as the PyTorch forward) for verification
# ---------------------------------------------------------------------------
def reference_forward(tokens, params, kernel_sizes=(3, 8)):
    x = params['embedding'][tokens]
    B, L, _ = x.shape
    pooled = None
    for i, ks in enumerate(kernel_sizes):
        l_out = L - ks + 1
        conv = jnp.zeros((B, l_out, params['wc'][i].shape[-1]), jnp.float32)
        gate = jnp.zeros_like(conv)
        for tau in range(ks):
            xs = x[:, tau:tau + l_out, :]
            conv = conv + jnp.einsum('ble,ek->blk', xs, params['wc'][i][tau])
            gate = gate + jnp.einsum('ble,ek->blk', xs, params['wg'][i][tau])
        conv = conv + params['bc'][i][None]
        gate = gate + params['bg'][i][None]
        m = (conv * jax.nn.sigmoid(gate)).max(axis=1)
        pooled = m if pooled is None else jnp.maximum(pooled, m)
    h = jnp.maximum(pooled @ params['wfc1'] + params['bfc1'], 0.0)
    return h @ params['wfc2'] + params['bfc2']


if __name__ == "__main__":
    # Module config (small): Attacker_MA_DQN(max_actions=8, num_nodes=10, time_horizon=15)
    num_nodes = 10
    time_horizon = 15
    max_length = time_horizon + 1              # 16
    kernel_sizes = (3, 8)

    params = init_params(jax.random.PRNGKey(0), num_nodes,
                         embedding_size=32, num_kernels=64,
                         kernel_sizes=kernel_sizes,
                         relevant_v_size=64, max_actions=8)

    # `states`: variable-length node-index sequences, padded with 0 to max_length
    # (what pad_sequence + the time_indicator row produce in the PyTorch module).
    states = [[3, 5, 2], [7, 1, 4, 6, 2, 9, 8]]
    B = len(states)
    tokens = jnp.zeros((B, max_length), jnp.int32)
    for b, seq in enumerate(states):
        tokens = tokens.at[b, :len(seq)].set(jnp.array(seq, jnp.int32))

    q = attacker_ma_dqn_forward(tokens, params, kernel_sizes)
    q = jax.block_until_ready(q)

    q_ref = reference_forward(tokens, params, kernel_sizes)
    assert q.shape == (B, 8)
    # bf16 MXU operands (f32 accumulation) -> slightly looser tolerance than pure f32.
    assert jnp.allclose(q, q_ref, atol=1e-2, rtol=1e-2), (q, q_ref)

    print("KERNEL_OK")
</pallas_src>

<mosaic_0001>
module attributes {stable_mosaic.version = 11 : i64} {
  func.func @_attacker_dqn_kernel(%arg0: i32, %arg1: memref<8x24xi32, #tpu.memory_space<vmem>>, %arg2: memref<128x256xbf16, #tpu.memory_space<vmem>>, %arg3: memref<1x256xf32, #tpu.memory_space<vmem>>, %arg4: memref<16x128xf32, #tpu.memory_space<vmem>>, %arg5: memref<64x128xbf16, #tpu.memory_space<vmem>>, %arg6: memref<1x128xf32, #tpu.memory_space<vmem>>, %arg7: memref<128x128xbf16, #tpu.memory_space<vmem>>, %arg8: memref<1x128xf32, #tpu.memory_space<vmem>>, %arg9: memref<8x128xf32, #tpu.memory_space<vmem>>, %arg10: memref<8x24x16xbf16, #tpu.memory_space<vmem>>) attributes {dimension_semantics = [#tpu.dimension_semantics<parallel>], iteration_bounds = array<i64: 1>, scalar_prefetch = 0 : i64, scratch_operands = 1 : i64, tpu.core_type = #tpu.core_type<tc>, window_params = [{transform_indices = @transform_0, window_bounds = array<i64: 8, 24>}, {pipeline_mode = #tpu.pipeline_mode<synchronous>, transform_indices = @transform_1, window_bounds = array<i64: 128, 256>}, {pipeline_mode = #tpu.pipeline_mode<synchronous>, transform_indices = @transform_2, window_bounds = array<i64: 1, 256>}, {pipeline_mode = #tpu.pipeline_mode<synchronous>, transform_indices = @transform_3, window_bounds = array<i64: 16, 128>}, {pipeline_mode = #tpu.pipeline_mode<synchronous>, transform_indices = @transform_4, window_bounds = array<i64: 64, 128>}, {pipeline_mode = #tpu.pipeline_mode<synchronous>, transform_indices = @transform_5, window_bounds = array<i64: 1, 128>}, {pipeline_mode = #tpu.pipeline_mode<synchronous>, transform_indices = @transform_6, window_bounds = array<i64: 128, 128>}, {pipeline_mode = #tpu.pipeline_mode<synchronous>, transform_indices = @transform_7, window_bounds = array<i64: 1, 128>}, {transform_indices = @transform_8, window_bounds = array<i64: 8, 128>}]} {
    %c0 = arith.constant 0 : index
    %c0_0 = arith.constant 0 : index
    %0 = vector.load %arg1[%c0, %c0_0] : memref<8x24xi32, #tpu.memory_space<vmem>>, vector<8x24xi32>
    %1 = tpu.iota {dimensions = array<i32: 2>} : vector<8x24x16xi32>
    %2 = vector.shape_cast %0 : vector<8x24xi32> to vector<8x24x1xi32>
    %3 = vector.broadcast %2 : vector<8x24x1xi32> to vector<8x24x16xi32>
    %4 = arith.cmpi eq, %3, %1 : vector<8x24x16xi32>
    %5 = arith.extui %4 : vector<8x24x16xi1> to vector<8x24x16xi32>
    %6 = arith.sitofp %5 : vector<8x24x16xi32> to vector<8x24x16xf32>
    %7 = arith.truncf %6 : vector<8x24x16xf32> to vector<8x24x16xbf16>
    %c0_1 = arith.constant 0 : index
    %c0_2 = arith.constant 0 : index
    %c0_3 = arith.constant 0 : index
    %8 = vector.load %arg10[%c0_1, %c0_2, %c0_3] : memref<8x24x16xbf16, #tpu.memory_space<vmem>>, vector<8x24x16xbf16>
    tpu.vector_store %arg10[%c0_1, %c0_2, %c0_3], %7 {strides = array<i32>} : memref<8x24x16xbf16, #tpu.memory_space<vmem>>, vector<8x24x16xbf16>,
    %c0_4 = arith.constant 0 : index
    %c0_5 = arith.constant 0 : index
    %c0_6 = arith.constant 0 : index
    %9 = vector.load %arg10[%c0_4, %c0_5, %c0_6] : memref<8x24x16xbf16, #tpu.memory_space<vmem>>, vector<8x16x16xbf16>
    %10 = vector.shape_cast %9 : vector<8x16x16xbf16> to vector<128x16xbf16>
    %c0_7 = arith.constant 0 : index
    %c1 = arith.constant 1 : index
    %c0_8 = arith.constant 0 : index
    %11 = vector.load %arg10[%c0_7, %c1, %c0_8] : memref<8x24x16xbf16, #tpu.memory_space<vmem>>, vector<8x16x16xbf16>
    %12 = vector.shape_cast %11 : vector<8x16x16xbf16> to vector<128x16xbf16>
    %c0_9 = arith.constant 0 : index
    %c2 = arith.constant 2 : index
    %c0_10 = arith.constant 0 : index
    %13 = vector.load %arg10[%c0_9, %c2, %c0_10] : memref<8x24x16xbf16, #tpu.memory_space<vmem>>, vector<8x16x16xbf16>
    %14 = vector.shape_cast %13 : vector<8x16x16xbf16> to vector<128x16xbf16>
    %c0_11 = arith.constant 0 : index
    %c3 = arith.constant 3 : index
    %c0_12 = arith.constant 0 : index
    %15 = vector.load %arg10[%c0_11, %c3, %c0_12] : memref<8x24x16xbf16, #tpu.memory_space<vmem>>, vector<8x16x16xbf16>
    %16 = vector.shape_cast %15 : vector<8x16x16xbf16> to vector<128x16xbf16>
    %c0_13 = arith.constant 0 : index
    %c4 = arith.constant 4 : index
    %c0_14 = arith.constant 0 : index
    %17 = vector.load %arg10[%c0_13, %c4, %c0_14] : memref<8x24x16xbf16, #tpu.memory_space<vmem>>, vector<8x16x16xbf16>
    %18 = vector.shape_cast %17 : vector<8x16x16xbf16> to vector<128x16xbf16>
    %c0_15 = arith.constant 0 : index
    %c5 = arith.constant 5 : index
    %c0_16 = arith.constant 0 : index
    %19 = vector.load %arg10[%c0_15, %c5, %c0_16] : memref<8x24x16xbf16, #tpu.memory_space<vmem>>, vector<8x16x16xbf16>
    %20 = vector.shape_cast %19 : vector<8x16x16xbf16> to vector<128x16xbf16>
    %c0_17 = arith.constant 0 : index
    %c6 = arith.constant 6 : index
    %c0_18 = arith.constant 0 : index
    %21 = vector.load %arg10[%c0_17, %c6, %c0_18] : memref<8x24x16xbf16, #tpu.memory_space<vmem>>, vector<8x16x16xbf16>
    %22 = vector.shape_cast %21 : vector<8x16x16xbf16> to vector<128x16xbf16>
    %c0_19 = arith.constant 0 : index
    %c7 = arith.constant 7 : index
    %c0_20 = arith.constant 0 : index
    %23 = vector.load %arg10[%c0_19, %c7, %c0_20] : memref<8x24x16xbf16, #tpu.memory_space<vmem>>, vector<8x16x16xbf16>
    %24 = vector.shape_cast %23 : vector<8x16x16xbf16> to vector<128x16xbf16>
    %25 = tpu.concatenate %10, %12, %14, %16, %18, %20, %22, %24 in 1 : vector<128x16xbf16>, vector<128x16xbf16>, vector<128x16xbf16>, vector<128x16xbf16>, vector<128x16xbf16>, vector<128x16xbf16>, vector<128x16xbf16>, vector<128x16xbf16> -> vector<128x128xbf16>
    %c0_21 = arith.constant 0 : index
    %c0_22 = arith.constant 0 : index
    %26 = vector.load %arg2[%c0_21, %c0_22] : memref<128x256xbf16, #tpu.memory_space<vmem>>, vector<128x256xbf16>
    %cst = arith.constant dense<0.000000e+00> : vector<128x256xf32>
    %27 = tpu.matmul %25, %26, %cst {dimension_numbers = #tpu.dot_dimension_numbers<[1], [0], [0], [1], [0, 0, 1, 1], [], []>} : vector<128x128xbf16>, vector<128x256xbf16>, vector<128x256xf32> -> vector<128x256xf32>
    %c0_23 = arith.constant 0 : index
    %c0_24 = arith.constant 0 : index
    %28 = vector.load %arg3[%c0_23, %c0_24] : memref<1x256xf32, #tpu.memory_space<vmem>>, vector<1x256xf32>
    %29 = vector.broadcast %28 : vector<1x256xf32> to vector<128x256xf32>
    %30 = arith.addf %27, %29 : vector<128x256xf32>
    %31 = vector.extract_strided_slice %30 {offsets = [0, 0], sizes = [128, 128], strides = [1, 1]} : vector<128x256xf32> to vector<128x128xf32>
    %32 = vector.extract_strided_slice %30 {offsets = [0, 128], sizes = [128, 128], strides = [1, 1]} : vector<128x256xf32> to vector<128x128xf32>
    %33 = arith.negf %32 : vector<128x128xf32>
    %34 = math.exp %33 : vector<128x128xf32>
    %cst_25 = arith.constant 1.000000e+00 : f32
    %35 = vector.broadcast %cst_25 : f32 to vector<128x128xf32>
    %36 = arith.addf %35, %34 : vector<128x128xf32>
    %37 = arith.divf %35, %36 : vector<128x128xf32>
    %38 = arith.mulf %31, %37 : vector<128x128xf32>
    %39 = vector.shape_cast %38 : vector<128x128xf32> to vector<8x16x128xf32>
    %c0_26 = arith.constant 0 : index
    %c0_27 = arith.constant 0 : index
    %40 = vector.load %arg4[%c0_26, %c0_27] : memref<16x128xf32, #tpu.memory_space<vmem>>, vector<16x128xf32>
    %41 = vector.shape_cast %40 : vector<16x128xf32> to vector<1x16x128xf32>
    %42 = vector.broadcast %41 : vector<1x16x128xf32> to vector<8x16x128xf32>
    %43 = arith.addf %39, %42 : vector<8x16x128xf32>
    %cst_28 = arith.constant dense<0xFF800000> : vector<8x128xf32>
    %44 = vector.multi_reduction <maximumf>, %43, %cst_28 [1] : vector<8x16x128xf32> to vector<8x128xf32>
    %45 = vector.extract_strided_slice %44 {offsets = [0, 0], sizes = [8, 64], strides = [1, 1]} : vector<8x128xf32> to vector<8x64xf32>
    %46 = vector.extract_strided_slice %44 {offsets = [0, 64], sizes = [8, 64], strides = [1, 1]} : vector<8x128xf32> to vector<8x64xf32>
    %47 = arith.maximumf %45, %46 : vector<8x64xf32>
    %48 = arith.truncf %47 : vector<8x64xf32> to vector<8x64xbf16>
    %c0_29 = arith.constant 0 : index
    %c0_30 = arith.constant 0 : index
    %49 = vector.load %arg5[%c0_29, %c0_30] : memref<64x128xbf16, #tpu.memory_space<vmem>>, vector<64x128xbf16>
    %cst_31 = arith.constant dense<0.000000e+00> : vector<8x128xf32>
    %50 = tpu.matmul %48, %49, %cst_31 {dimension_numbers = #tpu.dot_dimension_numbers<[1], [0], [0], [1], [0, 0, 1, 1], [], []>} : vector<8x64xbf16>, vector<64x128xbf16>, vector<8x128xf32> -> vector<8x128xf32>
    %c0_32 = arith.constant 0 : index
    %c0_33 = arith.constant 0 : index
    %51 = vector.load %arg6[%c0_32, %c0_33] : memref<1x128xf32, #tpu.memory_space<vmem>>, vector<1x128xf32>
    %52 = vector.broadcast %51 : vector<1x128xf32> to vector<8x128xf32>
    %53 = arith.addf %50, %52 : vector<8x128xf32>
    %cst_34 = arith.constant 0.000000e+00 : f32
    %54 = vector.broadcast %cst_34 : f32 to vector<8x128xf32>
    %55 = arith.maximumf %53, %54 : vector<8x128xf32>
    %56 = arith.truncf %55 : vector<8x128xf32> to vector<8x128xbf16>
    %c0_35 = arith.constant 0 : index
    %c0_36 = arith.constant 0 : index
    %57 = vector.load %arg7[%c0_35, %c0_36] : memref<128x128xbf16, #tpu.memory_space<vmem>>, vector<128x128xbf16>
    %cst_37 = arith.constant dense<0.000000e+00> : vector<8x128xf32>
    %58 = tpu.matmul %56, %57, %cst_37 {dimension_numbers = #tpu.dot_dimension_numbers<[1], [0], [0], [1], [0, 0, 1, 1], [], []>} : vector<8x128xbf16>, vector<128x128xbf16>, vector<8x128xf32> -> vector<8x128xf32>
    %c0_38 = arith.constant 0 : index
    %c0_39 = arith.constant 0 : index
    %59 = vector.load %arg8[%c0_38, %c0_39] : memref<1x128xf32, #tpu.memory_space<vmem>>, vector<1x128xf32>
    %60 = vector.broadcast %59 : vector<1x128xf32> to vector<8x128xf32>
    %61 = arith.addf %58, %60 : vector<8x128xf32>
    %c0_40 = arith.constant 0 : index
    %c0_41 = arith.constant 0 : index
    %62 = vector.load %arg9[%c0_40, %c0_41] : memref<8x128xf32, #tpu.memory_space<vmem>>, vector<8x128xf32>
    tpu.vector_store %arg9[%c0_40, %c0_41], %61 {strides = array<i32>} : memref<8x128xf32, #tpu.memory_space<vmem>>, vector<8x128xf32>,
    return
  }
  func.func @transform_0(%arg0: i32) -> (i32, i32) {
    %c0_i32 = arith.constant 0 : i32
    %c0_i32_0 = arith.constant 0 : i32
    return %arg0, %c0_i32 : i32, i32
  }
  func.func @transform_1(%arg0: i32) -> (i32, i32) {
    %c0_i32 = arith.constant 0 : i32
    %c0_i32_0 = arith.constant 0 : i32
    %c0_i32_1 = arith.constant 0 : i32
    return %c0_i32, %c0_i32_0 : i32, i32
  }
  func.func @transform_2(%arg0: i32) -> (i32, i32) {
    %c0_i32 = arith.constant 0 : i32
    %c0_i32_0 = arith.constant 0 : i32
    %c0_i32_1 = arith.constant 0 : i32
    return %c0_i32, %c0_i32_0 : i32, i32
  }
  func.func @transform_3(%arg0: i32) -> (i32, i32) {
    %c0_i32 = arith.constant 0 : i32
    %c0_i32_0 = arith.constant 0 : i32
    %c0_i32_1 = arith.constant 0 : i32
    return %c0_i32, %c0_i32_0 : i32, i32
  }
  func.func @transform_4(%arg0: i32) -> (i32, i32) {
    %c0_i32 = arith.constant 0 : i32
    %c0_i32_0 = arith.constant 0 : i32
    %c0_i32_1 = arith.constant 0 : i32
    return %c0_i32, %c0_i32_0 : i32, i32
  }
  func.func @transform_5(%arg0: i32) -> (i32, i32) {
    %c0_i32 = arith.constant 0 : i32
    %c0_i32_0 = arith.constant 0 : i32
    %c0_i32_1 = arith.constant 0 : i32
    return %c0_i32, %c0_i32_0 : i32, i32
  }
  func.func @transform_6(%arg0: i32) -> (i32, i32) {
    %c0_i32 = arith.constant 0 : i32
    %c0_i32_0 = arith.constant 0 : i32
    %c0_i32_1 = arith.constant 0 : i32
    return %c0_i32, %c0_i32_0 : i32, i32
  }
  func.func @transform_7(%arg0: i32) -> (i32, i32) {
    %c0_i32 = arith.constant 0 : i32
    %c0_i32_0 = arith.constant 0 : i32
    %c0_i32_1 = arith.constant 0 : i32
    return %c0_i32, %c0_i32_0 : i32, i32
  }
  func.func @transform_8(%arg0: i32) -> (i32, i32) {
    %c0_i32 = arith.constant 0 : i32
    %c0_i32_0 = arith.constant 0 : i32
    return %arg0, %c0_i32 : i32, i32
  }
}

</mosaic_0001>

<llo_original>
// kernel: tpu_custom_call.1
$region0: #{tpu_custom_call.1}
  #allocation0 [shape = 'u32[]', space=smem, size = 0x4, offset = 0x4, fixed_abs, tag = 'smem constant byte address 0x4 - core index']
  #allocation1 [shape = 'u32[144,128]{1,0:T(1,128)}', space=vmem, size = 0x12000, scoped, tag = 'internal scratch']
  #allocation2 [shape = 'bf16[8,24,16]{2,1,0:T(8,128)(2,1)}', space=vmem, size = 0xc000, scoped, tag = 'scratch operand']
  %s0 = inlined_call_operand.hbm [shape: s32[8,24], index: 0, kind: input, shape index: {}]
  %s1 = inlined_call_operand.hbm [shape: bf16[128,256], index: 1, kind: input, shape index: {}]
  %s2 = inlined_call_operand.vmem [shape: f32[1,256], index: 2, kind: input, shape index: {}]
  %s3 = inlined_call_operand.hbm [shape: f32[16,128], index: 3, kind: input, shape index: {}]
  %s4 = inlined_call_operand.hbm [shape: bf16[64,128], index: 4, kind: input, shape index: {}]
  %s5 = inlined_call_operand.vmem [shape: f32[1,128], index: 5, kind: input, shape index: {}]
  %s6 = inlined_call_operand.hbm [shape: bf16[128,128], index: 6, kind: input, shape index: {}]
  %s7 = inlined_call_operand.vmem [shape: f32[1,128], index: 7, kind: input, shape index: {}]
  %s8 = inlined_call_operand.hbm [shape: f32[8,128], index: 8, kind: output, shape index: {}]
  %s9 = sld [smem:[#allocation0]]
  $region62: #{tpu_custom_call.1} parent=0
    _
  %s11 = ssub.s32 1, %s9
  %s12 = scalar_select 0, %s11, %s9
  $region1: #{tpu_custom_call.1} parent=0
    #allocation3 [shape = 'u8[4096]{0}', space=vmem, size = 0x1000, scoped, tag = 'input window, operand 0, single buffered']
    #allocation4 [shape = 's32[1]{0}', space=sflag, size = 0x4, scoped, tag = 'scoped memory for tpu_custom_call.1']
    #allocation5 [shape = 's32[1]{0}', space=sflag, size = 0x4, scoped, tag = 'scoped memory for tpu_custom_call.1']
    #allocation6 [shape = 'u8[65536]{0}', space=vmem, size = 0x10000, scoped, tag = 'input window, operand 1, single buffered']
    #allocation7 [shape = 's32[1]{0}', space=sflag, size = 0x4, scoped, tag = 'scoped memory for tpu_custom_call.1']
    #allocation8 [shape = 'u8[8192]{0}', space=vmem, size = 0x2000, scoped, tag = 'input window, operand 3, single buffered']
    #allocation9 [shape = 'u8[16384]{0}', space=vmem, size = 0x4000, scoped, tag = 'input window, operand 4, single buffered']
    #allocation10 [shape = 's32[1]{0}', space=sflag, size = 0x4, scoped, tag = 'scoped memory for tpu_custom_call.1']
    #allocation11 [shape = 'u8[32768]{0}', space=vmem, size = 0x8000, scoped, tag = 'input window, operand 6, single buffered']
    #allocation12 [shape = 'u8[4096]{0}', space=vmem, size = 0x1000, scoped, tag = 'output window, operand 0, single buffered']
    %13 = vsyncpa [#allocation4], 0
    %14 = vsyncpa [#allocation7], 0
    %15 = vsyncpa [#allocation10], 0
    %16 = vsyncpa [#allocation5], 0
    // Predicated region
    $region2: #{tpu_custom_call.1} parent=1 // pred_check
      _
    $region3: #{tpu_custom_call.1} parent=1 // pred_check_branch
      %18 = sbr.rel (0) target = $region5
    $region4: #{tpu_custom_call.1} parent=1 // pred_region
      %s20 = ssub.s32 128, 128
      %21 = vsyncadd [#allocation4], %s20
      %s23 = sshll.u32 [#allocation3], 4
      %s24 = int_to_ptr.vmem [resolvable:$true] %s23
      %26 = dma.hbm_to_vmem [thread:$0]  %s0, 128, %s24, [#allocation4]
    $region5: #{tpu_custom_call.1} parent=1 // pred_fallthru
      _
    // Predicated region
    $region6: #{tpu_custom_call.1} parent=1 // pred_check
      _
    $region7: #{tpu_custom_call.1} parent=1 // pred_check_branch
      %28 = sbr.rel (0) target = $region9
    $region8: #{tpu_custom_call.1} parent=1 // pred_region
      %s30 = ssub.s32 2048, 2048
      %31 = vsyncadd [#allocation7], %s30
      %s32 = sshll.u32 [#allocation6], 4
      %s33 = int_to_ptr.vmem [resolvable:$true] %s32
      %38 = dma.hbm_to_vmem [thread:$0]  %s1, 2048, %s33, [#allocation7], 128, 128, 8
    $region9: #{tpu_custom_call.1} parent=1 // pred_fallthru
      _
    // Predicated region
    $region10: #{tpu_custom_call.1} parent=1 // pred_check
      _
    $region11: #{tpu_custom_call.1} parent=1 // pred_check_branch
      %40 = sbr.rel (0) target = $region13
    $region12: #{tpu_custom_call.1} parent=1 // pred_region
      _
    $region13: #{tpu_custom_call.1} parent=1 // pred_fallthru
      _
    // Predicated region
    $region14: #{tpu_custom_call.1} parent=1 // pred_check
      _
    $region15: #{tpu_custom_call.1} parent=1 // pred_check_branch
      %42 = sbr.rel (0) target = $region17
    $region16: #{tpu_custom_call.1} parent=1 // pred_region
      %s44 = ssub.s32 256, 256
      %45 = vsyncadd [#allocation7], %s44
      %s46 = sshll.u32 [#allocation8], 4
      %s47 = int_to_ptr.vmem [resolvable:$true] %s46
      %52 = dma.hbm_to_vmem [thread:$0]  %s3, 256, %s47, [#allocation7], 128, 128, 8
    $region17: #{tpu_custom_call.1} parent=1 // pred_fallthru
      _
    // Predicated region
    $region18: #{tpu_custom_call.1} parent=1 // pred_check
      _
    $region19: #{tpu_custom_call.1} parent=1 // pred_check_branch
      %54 = sbr.rel (0) target = $region21
    $region20: #{tpu_custom_call.1} parent=1 // pred_region
      %s56 = ssub.s32 512, 512
      %57 = vsyncadd [#allocation10], %s56
      %s58 = sshll.u32 [#allocation9], 4
      %s59 = int_to_ptr.vmem [resolvable:$true] %s58
      %64 = dma.hbm_to_vmem [thread:$0]  %s4, 512, %s59, [#allocation10], 64, 64, 4
    $region21: #{tpu_custom_call.1} parent=1 // pred_fallthru
      _
    // Predicated region
    $region22: #{tpu_custom_call.1} parent=1 // pred_check
      _
    $region23: #{tpu_custom_call.1} parent=1 // pred_check_branch
      %66 = sbr.rel (0) target = $region25
    $region24: #{tpu_custom_call.1} parent=1 // pred_region
      _
    $region25: #{tpu_custom_call.1} parent=1 // pred_fallthru
      _
    // Predicated region
    $region26: #{tpu_custom_call.1} parent=1 // pred_check
      _
    $region27: #{tpu_custom_call.1} parent=1 // pred_check_branch
      %68 = sbr.rel (0) target = $region29
    $region28: #{tpu_custom_call.1} parent=1 // pred_region
      %s70 = ssub.s32 1024, 1024
      %71 = vsyncadd [#allocation10], %s70
      %s72 = sshll.u32 [#allocation11], 4
      %s73 = int_to_ptr.vmem [resolvable:$true] %s72
      %78 = dma.hbm_to_vmem [thread:$0]  %s6, 1024, %s73, [#allocation10], 64, 64, 4
    $region29: #{tpu_custom_call.1} parent=1 // pred_fallthru
      _
    // Predicated region
    $region30: #{tpu_custom_call.1} parent=1 // pred_check
      _
    $region31: #{tpu_custom_call.1} parent=1 // pred_check_branch
      %80 = sbr.rel (0) target = $region33
    $region32: #{tpu_custom_call.1} parent=1 // pred_region
      _
    $region33: #{tpu_custom_call.1} parent=1 // pred_fallthru
      _
    // Predicated region
    $region34: #{tpu_custom_call.1} parent=1 // pred_check
      _
    $region35: #{tpu_custom_call.1} parent=1 // pred_check_branch
      %82 = sbr.rel (0) target = $region37
    $region36: #{tpu_custom_call.1} parent=1 // pred_region
      %83 = dma.done [#allocation4], 128
    $region37: #{tpu_custom_call.1} parent=1 // pred_fallthru
      _
    // Predicated region
    $region38: #{tpu_custom_call.1} parent=1 // pred_check
      _
    $region39: #{tpu_custom_call.1} parent=1 // pred_check_branch
      %85 = sbr.rel (0) target = $region41
    $region40: #{tpu_custom_call.1} parent=1 // pred_region
      %86 = dma.done [#allocation7], 2048
    $region41: #{tpu_custom_call.1} parent=1 // pred_fallthru
      _
    // Predicated region
    $region42: #{tpu_custom_call.1} parent=1 // pred_check
      _
    $region43: #{tpu_custom_call.1} parent=1 // pred_check_branch
      %88 = sbr.rel (0) target = $region45
    $region44: #{tpu_custom_call.1} parent=1 // pred_region
      %89 = dma.done [#allocation7], 256
    $region45: #{tpu_custom_call.1} parent=1 // pred_fallthru
      _
    // Predicated region
    $region46: #{tpu_custom_call.1} parent=1 // pred_check
      _
    $region47: #{tpu_custom_call.1} parent=1 // pred_check_branch
      %91 = sbr.rel (0) target = $region49
    $region48: #{tpu_custom_call.1} parent=1 // pred_region
      %92 = dma.done [#allocation10], 512
    $region49: #{tpu_custom_call.1} parent=1 // pred_fallthru
      _
    // Predicated region
    $region50: #{tpu_custom_call.1} parent=1 // pred_check
      _
    $region51: #{tpu_custom_call.1} parent=1 // pred_check_branch
      %94 = sbr.rel (0) target = $region53
    $region52: #{tpu_custom_call.1} parent=1 // pred_region
      %95 = dma.done [#allocation10], 1024
    $region53: #{tpu_custom_call.1} parent=1 // pred_fallthru
      _
    %v97 = vld [vmem:[#allocation3] sm:$0xff]
    %v98 = vlaneseq
    %v99 = vand.u32 %v98, 127
    %v100 = vlaneseq
    %v101 = vshrl.u32 %v100, 7
    %v102 = vsub.s32 0, %v101
    %v103 = vrot.slane %v97, %v102
    %105 = vbcast.lane.b32.xlu0 %v103, 256
    %v106 = vpop.permute.xlu0 %105
    %s108 = sor.u32 256, 8
    %109 = vbcast.lane.b32.xlu0 %v103, %s108
    %v110 = vpop.permute.xlu0 %109
    %s112 = sor.u32 256, 16
    %113 = vbcast.lane.b32.xlu0 %v103, %s112
    %v114 = vpop.permute.xlu0 %113
    %v115 = vlaneseq
    %v116 = vshrl.u32 %v115, 7
    %v117 = vsub.s32 1, %v116
    %v118 = vrot.slane %v97, %v117
    %120 = vbcast.lane.b32.xlu0 %v118, 256
    %v121 = vpop.permute.xlu0 %120
    %s123 = sor.u32 256, 8
    %124 = vbcast.lane.b32.xlu0 %v118, %s123
    %v125 = vpop.permute.xlu0 %124
    %s127 = sor.u32 256, 16
    %128 = vbcast.lane.b32.xlu0 %v118, %s127
    %v129 = vpop.permute.xlu0 %128
    %v130 = vlaneseq
    %v131 = vshrl.u32 %v130, 7
    %v132 = vsub.s32 2, %v131
    %v133 = vrot.slane %v97, %v132
    %135 = vbcast.lane.b32.xlu0 %v133, 256
    %v136 = vpop.permute.xlu0 %135
    %s138 = sor.u32 256, 8
    %139 = vbcast.lane.b32.xlu0 %v133, %s138
    %v140 = vpop.permute.xlu0 %139
    %s142 = sor.u32 256, 16
    %143 = vbcast.lane.b32.xlu0 %v133, %s142
    %v144 = vpop.permute.xlu0 %143
    %v145 = vlaneseq
    %v146 = vshrl.u32 %v145, 7
    %v147 = vsub.s32 3, %v146
    %v148 = vrot.slane %v97, %v147
    %150 = vbcast.lane.b32.xlu0 %v148, 256
    %v151 = vpop.permute.xlu0 %150
    %s153 = sor.u32 256, 8
    %154 = vbcast.lane.b32.xlu0 %v148, %s153
    %v155 = vpop.permute.xlu0 %154
    %s157 = sor.u32 256, 16
    %158 = vbcast.lane.b32.xlu0 %v148, %s157
    %v159 = vpop.permute.xlu0 %158
    %v160 = vlaneseq
    %v161 = vshrl.u32 %v160, 7
    %v162 = vsub.s32 4, %v161
    %v163 = vrot.slane %v97, %v162
    %165 = vbcast.lane.b32.xlu0 %v163, 256
    %v166 = vpop.permute.xlu0 %165
    %s168 = sor.u32 256, 8
    %169 = vbcast.lane.b32.xlu0 %v163, %s168
    %v170 = vpop.permute.xlu0 %169
    %s172 = sor.u32 256, 16
    %173 = vbcast.lane.b32.xlu0 %v163, %s172
    %v174 = vpop.permute.xlu0 %173
    %v175 = vlaneseq
    %v176 = vshrl.u32 %v175, 7
    %v177 = vsub.s32 5, %v176
    %v178 = vrot.slane %v97, %v177
    %180 = vbcast.lane.b32.xlu0 %v178, 256
    %v181 = vpop.permute.xlu0 %180
    %s183 = sor.u32 256, 8
    %184 = vbcast.lane.b32.xlu0 %v178, %s183
    %v185 = vpop.permute.xlu0 %184
    %s187 = sor.u32 256, 16
    %188 = vbcast.lane.b32.xlu0 %v178, %s187
    %v189 = vpop.permute.xlu0 %188
    %v190 = vlaneseq
    %v191 = vshrl.u32 %v190, 7
    %v192 = vsub.s32 6, %v191
    %v193 = vrot.slane %v97, %v192
    %195 = vbcast.lane.b32.xlu0 %v193, 256
    %v196 = vpop.permute.xlu0 %195
    %s198 = sor.u32 256, 8
    %199 = vbcast.lane.b32.xlu0 %v193, %s198
    %v200 = vpop.permute.xlu0 %199
    %s202 = sor.u32 256, 16
    %203 = vbcast.lane.b32.xlu0 %v193, %s202
    %v204 = vpop.permute.xlu0 %203
    %v205 = vlaneseq
    %v206 = vshrl.u32 %v205, 7
    %v207 = vsub.s32 7, %v206
    %v208 = vrot.slane %v97, %v207
    %210 = vbcast.lane.b32.xlu0 %v208, 256
    %v211 = vpop.permute.xlu0 %210
    %s213 = sor.u32 256, 8
    %214 = vbcast.lane.b32.xlu0 %v208, %s213
    %v215 = vpop.permute.xlu0 %214
    %s217 = sor.u32 256, 16
    %218 = vbcast.lane.b32.xlu0 %v208, %s217
    %v219 = vpop.permute.xlu0 %218
    %vm220 = vcmp.eq.s32.totalorder %v106, %v99
    %vm221 = vcmp.eq.s32.totalorder %v110, %v99
    %vm222 = vcmp.eq.s32.totalorder %v114, %v99
    %vm223 = vcmp.eq.s32.totalorder %v121, %v99
    %vm224 = vcmp.eq.s32.totalorder %v125, %v99
    %vm225 = vcmp.eq.s32.totalorder %v129, %v99
    %vm226 = vcmp.eq.s32.totalorder %v136, %v99
    %vm227 = vcmp.eq.s32.totalorder %v140, %v99
    %vm228 = vcmp.eq.s32.totalorder %v144, %v99
    %vm229 = vcmp.eq.s32.totalorder %v151, %v99
    %vm230 = vcmp.eq.s32.totalorder %v155, %v99
    %vm231 = vcmp.eq.s32.totalorder %v159, %v99
    %vm232 = vcmp.eq.s32.totalorder %v166, %v99
    %vm233 = vcmp.eq.s32.totalorder %v170, %v99
    %vm234 = vcmp.eq.s32.totalorder %v174, %v99
    %vm235 = vcmp.eq.s32.totalorder %v181, %v99
    %vm236 = vcmp.eq.s32.totalorder %v185, %v99
    %vm237 = vcmp.eq.s32.totalorder %v189, %v99
    %vm238 = vcmp.eq.s32.totalorder %v196, %v99
    %vm239 = vcmp.eq.s32.totalorder %v200, %v99
    %vm240 = vcmp.eq.s32.totalorder %v204, %v99
    %vm241 = vcmp.eq.s32.totalorder %v211, %v99
    %vm242 = vcmp.eq.s32.totalorder %v215, %v99
    %vm243 = vcmp.eq.s32.totalorder %v219, %v99
    %v244 = vsel %vm220, 1, 0
    %v245 = vsel %vm221, 1, 0
    %v246 = vsel %vm222, 1, 0
    %v247 = vsel %vm223, 1, 0
    %v248 = vsel %vm224, 1, 0
    %v249 = vsel %vm225, 1, 0
    %v250 = vsel %vm226, 1, 0
    %v251 = vsel %vm227, 1, 0
    %v252 = vsel %vm228, 1, 0
    %v253 = vsel %vm229, 1, 0
    %v254 = vsel %vm230, 1, 0
    %v255 = vsel %vm231, 1, 0
    %v256 = vsel %vm232, 1, 0
    %v257 = vsel %vm233, 1, 0
    %v258 = vsel %vm234, 1, 0
    %v259 = vsel %vm235, 1, 0
    %v260 = vsel %vm236, 1, 0
    %v261 = vsel %vm237, 1, 0
    %v262 = vsel %vm238, 1, 0
    %v263 = vsel %vm239, 1, 0
    %v264 = vsel %vm240, 1, 0
    %v265 = vsel %vm241, 1, 0
    %v266 = vsel %vm242, 1, 0
    %v267 = vsel %vm243, 1, 0
    %v268 = vcvt.s32.f32 %v244
    %v269 = vcvt.s32.f32 %v245
    %v270 = vcvt.s32.f32 %v246
    %v271 = vcvt.s32.f32 %v247
    %v272 = vcvt.s32.f32 %v248
    %v273 = vcvt.s32.f32 %v249
    %v274 = vcvt.s32.f32 %v250
    %v275 = vcvt.s32.f32 %v251
    %v276 = vcvt.s32.f32 %v252
    %v277 = vcvt.s32.f32 %v253
    %v278 = vcvt.s32.f32 %v254
    %v279 = vcvt.s32.f32 %v255
    %v280 = vcvt.s32.f32 %v256
    %v281 = vcvt.s32.f32 %v257
    %v282 = vcvt.s32.f32 %v258
    %v283 = vcvt.s32.f32 %v259
    %v284 = vcvt.s32.f32 %v260
    %v285 = vcvt.s32.f32 %v261
    %v286 = vcvt.s32.f32 %v262
    %v287 = vcvt.s32.f32 %v263
    %v288 = vcvt.s32.f32 %v264
    %v289 = vcvt.s32.f32 %v265
    %v290 = vcvt.s32.f32 %v266
    %v291 = vcvt.s32.f32 %v267
    %v292 = vpack.c.bf16 %v269, %v268
    %v293 = vpack.c.bf16 %v270, %v270
    %v294 = vpack.c.bf16 %v272, %v271
    %v295 = vpack.c.bf16 %v273, %v273
    %v296 = vpack.c.bf16 %v275, %v274
    %v297 = vpack.c.bf16 %v276, %v276
    %v298 = vpack.c.bf16 %v278, %v277
    %v299 = vpack.c.bf16 %v279, %v279
    %v300 = vpack.c.bf16 %v281, %v280
    %v301 = vpack.c.bf16 %v282, %v282
    %v302 = vpack.c.bf16 %v284, %v283
    %v303 = vpack.c.bf16 %v285, %v285
    %v304 = vpack.c.bf16 %v287, %v286
    %v305 = vpack.c.bf16 %v288, %v288
    %v306 = vpack.c.bf16 %v290, %v289
    %v307 = vpack.c.bf16 %v291, %v291
    %v324 = vunpack.c.l.b16 %v292
    %v325 = vunpack.c.h.b16 %v292
    %v326 = vunpack.c.l.b16 %v293
    %v327 = vunpack.c.l.b16 %v294
    %v328 = vunpack.c.h.b16 %v294
    %v329 = vunpack.c.l.b16 %v295
    %v330 = vunpack.c.l.b16 %v296
    %v331 = vunpack.c.h.b16 %v296
    %v332 = vunpack.c.l.b16 %v297
    %v333 = vunpack.c.l.b16 %v298
    %v334 = vunpack.c.h.b16 %v298
    %v335 = vunpack.c.l.b16 %v299
    %v336 = vunpack.c.l.b16 %v300
    %v337 = vunpack.c.h.b16 %v300
    %v338 = vunpack.c.l.b16 %v301
    %v339 = vunpack.c.l.b16 %v302
    %v340 = vunpack.c.h.b16 %v302
    %v341 = vunpack.c.l.b16 %v303
    %v342 = vunpack.c.l.b16 %v304
    %v343 = vunpack.c.h.b16 %v304
    %v344 = vunpack.c.l.b16 %v305
    %v345 = vunpack.c.l.b16 %v306
    %v346 = vunpack.c.h.b16 %v306
    %v347 = vunpack.c.l.b16 %v307
    %v348 = vpack.c.b16 %v324, %v324
    %v349 = vpack.c.b16 %v325, %v325
    %v350 = vpack.c.b16 %v326, %v326
    %v351 = vpack.c.b16 %v327, %v327
    %v352 = vpack.c.b16 %v328, %v328
    %v353 = vpack.c.b16 %v329, %v329
    %v354 = vpack.c.b16 %v330, %v330
    %v355 = vpack.c.b16 %v331, %v331
    %v356 = vpack.c.b16 %v332, %v332
    %v357 = vpack.c.b16 %v333, %v333
    %v358 = vpack.c.b16 %v334, %v334
    %v359 = vpack.c.b16 %v335, %v335
    %v360 = vpack.c.b16 %v336, %v336
    %v361 = vpack.c.b16 %v337, %v337
    %v362 = vpack.c.b16 %v338, %v338
    %v363 = vpack.c.b16 %v339, %v339
    %v364 = vpack.c.b16 %v340, %v340
    %v365 = vpack.c.b16 %v341, %v341
    %v366 = vpack.c.b16 %v342, %v342
    %v367 = vpack.c.b16 %v343, %v343
    %v368 = vpack.c.b16 %v344, %v344
    %v369 = vpack.c.b16 %v345, %v345
    %v370 = vpack.c.b16 %v346, %v346
    %v371 = vpack.c.b16 %v347, %v347
    %vm396 = vcmask 125952
    %397 = vst.msk [vmem:[#allocation2] sm:$0xf] %vm396, %v348
    %398 = vst.msk [vmem:[#allocation2 + $0x4] sm:$0xf] %vm396, %v349
    %399 = vst.msk [vmem:[#allocation2 + $0x8] sm:$0xf] %vm396, %v350
    %400 = vst.msk [vmem:[#allocation2 + $0xc] sm:$0xf] %vm396, %v351
    %401 = vst.msk [vmem:[#allocation2 + $0x10] sm:$0xf] %vm396, %v352
    %402 = vst.msk [vmem:[#allocation2 + $0x14] sm:$0xf] %vm396, %v353
    %403 = vst.msk [vmem:[#allocation2 + $0x18] sm:$0xf] %vm396, %v354
    %404 = vst.msk [vmem:[#allocation2 + $0x1c] sm:$0xf] %vm396, %v355
    %405 = vst.msk [vmem:[#allocation2 + $0x20] sm:$0xf] %vm396, %v356
    %406 = vst.msk [vmem:[#allocation2 + $0x24] sm:$0xf] %vm396, %v357
    %407 = vst.msk [vmem:[#allocation2 + $0x28] sm:$0xf] %vm396, %v358
    %408 = vst.msk [vmem:[#allocation2 + $0x2c] sm:$0xf] %vm396, %v359
    %409 = vst.msk [vmem:[#allocation2 + $0x30] sm:$0xf] %vm396, %v360
    %410 = vst.msk [vmem:[#allocation2 + $0x34] sm:$0xf] %vm396, %v361
    %411 = vst.msk [vmem:[#allocation2 + $0x38] sm:$0xf] %vm396, %v362
    %412 = vst.msk [vmem:[#allocation2 + $0x3c] sm:$0xf] %vm396, %v363
    %413 = vst.msk [vmem:[#allocation2 + $0x40] sm:$0xf] %vm396, %v364
    %414 = vst.msk [vmem:[#allocation2 + $0x44] sm:$0xf] %vm396, %v365
    %415 = vst.msk [vmem:[#allocation2 + $0x48] sm:$0xf] %vm396, %v366
    %416 = vst.msk [vmem:[#allocation2 + $0x4c] sm:$0xf] %vm396, %v367
    %417 = vst.msk [vmem:[#allocation2 + $0x50] sm:$0xf] %vm396, %v368
    %418 = vst.msk [vmem:[#allocation2 + $0x54] sm:$0xf] %vm396, %v369
    %419 = vst.msk [vmem:[#allocation2 + $0x58] sm:$0xf] %vm396, %v370
    %420 = vst.msk [vmem:[#allocation2 + $0x5c] sm:$0xf] %vm396, %v371
    %v421 = vld [vmem:[#allocation2] sm:$0xf]
    %v422 = vld [vmem:[#allocation2 + $0x4] sm:$0xf]
    %v423 = vld [vmem:[#allocation2 + $0xc] sm:$0xf]
    %v424 = vld [vmem:[#allocation2 + $0x10] sm:$0xf]
    %v425 = vld [vmem:[#allocation2 + $0x18] sm:$0xf]
    %v426 = vld [vmem:[#allocation2 + $0x1c] sm:$0xf]
    %v427 = vld [vmem:[#allocation2 + $0x24] sm:$0xf]
    %v428 = vld [vmem:[#allocation2 + $0x28] sm:$0xf]
    %v429 = vld [vmem:[#allocation2 + $0x30] sm:$0xf]
    %v430 = vld [vmem:[#allocation2 + $0x34] sm:$0xf]
    %v431 = vld [vmem:[#allocation2 + $0x3c] sm:$0xf]
    %v432 = vld [vmem:[#allocation2 + $0x40] sm:$0xf]
    %v433 = vld [vmem:[#allocation2 + $0x48] sm:$0xf]
    %v434 = vld [vmem:[#allocation2 + $0x4c] sm:$0xf]
    %v435 = vld [vmem:[#allocation2 + $0x54] sm:$0xf]
    %v436 = vld [vmem:[#allocation2 + $0x58] sm:$0xf]
    %v437 = vld [vmem:[#allocation2 + $0x8] sm:$0x1]
    %v438 = vld [vmem:[#allocation2 + $0x14] sm:$0x1]
    %v439 = vld [vmem:[#allocation2 + $0x20] sm:$0x1]
    %v440 = vld [vmem:[#allocation2 + $0x2c] sm:$0x1]
    %v441 = vld [vmem:[#allocation2 + $0x38] sm:$0x1]
    %v442 = vld [vmem:[#allocation2 + $0x44] sm:$0x1]
    %v443 = vld [vmem:[#allocation2 + $0x50] sm:$0x1]
    %v444 = vld [vmem:[#allocation2 + $0x5c] sm:$0x1]
    %vm445 = vsmask.f32 3328
    %vm446 = vsmask.f32 7440
    %vm447 = vmor %vm445, %vm446
    %v449 = vshrl.u32 %v421, 16
    %v451 = vrot.slane %v449, 4
    %v452 = vshll.u32 %v421, 16
    %v454 = vrot.slane %v452, 5
    %v455 = vor.u32 %v451, %v454
    %v456 = vrot.slane %v455, 4
    %v458 = vshll.u32 %v422, 16
    %v460 = vrot.slane %v458, 5
    %v461 = vsel %vm447, %v456, %v460
    %v462 = vshrl.u32 %v422, 16
    %v464 = vrot.slane %v462, 4
    %v465 = vor.u32 %v464, %v460
    %v466 = vrot.slane %v465, 4
    %v468 = vshll.u32 %v437, 16
    %v470 = vrot.slane %v468, 5
    %v471 = vsel %vm447, %v466, %v470
    %v473 = vshrl.u32 %v423, 16
    %v475 = vrot.slane %v473, 4
    %v476 = vshll.u32 %v423, 16
    %v478 = vrot.slane %v476, 5
    %v479 = vor.u32 %v475, %v478
    %v480 = vrot.slane %v479, 4
    %v482 = vshll.u32 %v424, 16
    %v484 = vrot.slane %v482, 5
    %v485 = vsel %vm447, %v480, %v484
    %v486 = vshrl.u32 %v424, 16
    %v488 = vrot.slane %v486, 4
    %v489 = vor.u32 %v488, %v484
    %v490 = vrot.slane %v489, 4
    %v492 = vshll.u32 %v438, 16
    %v494 = vrot.slane %v492, 5
    %v495 = vsel %vm447, %v490, %v494
    %v497 = vshrl.u32 %v425, 16
    %v499 = vrot.slane %v497, 4
    %v500 = vshll.u32 %v425, 16
    %v502 = vrot.slane %v500, 5
    %v503 = vor.u32 %v499, %v502
    %v504 = vrot.slane %v503, 4
    %v506 = vshll.u32 %v426, 16
    %v508 = vrot.slane %v506, 5
    %v509 = vsel %vm447, %v504, %v508
    %v510 = vshrl.u32 %v426, 16
    %v512 = vrot.slane %v510, 4
    %v513 = vor.u32 %v512, %v508
    %v514 = vrot.slane %v513, 4
    %v516 = vshll.u32 %v439, 16
    %v518 = vrot.slane %v516, 5
    %v519 = vsel %vm447, %v514, %v518
    %v521 = vshrl.u32 %v427, 16
    %v523 = vrot.slane %v521, 4
    %v524 = vshll.u32 %v427, 16
    %v526 = vrot.slane %v524, 5
    %v527 = vor.u32 %v523, %v526
    %v528 = vrot.slane %v527, 4
    %v530 = vshll.u32 %v428, 16
    %v532 = vrot.slane %v530, 5
    %v533 = vsel %vm447, %v528, %v532
    %v534 = vshrl.u32 %v428, 16
    %v536 = vrot.slane %v534, 4
    %v537 = vor.u32 %v536, %v532
    %v538 = vrot.slane %v537, 4
    %v540 = vshll.u32 %v440, 16
    %v542 = vrot.slane %v540, 5
    %v543 = vsel %vm447, %v538, %v542
    %v545 = vshrl.u32 %v429, 16
    %v547 = vrot.slane %v545, 4
    %v548 = vshll.u32 %v429, 16
    %v550 = vrot.slane %v548, 5
    %v551 = vor.u32 %v547, %v550
    %v552 = vrot.slane %v551, 4
    %v554 = vshll.u32 %v430, 16
    %v556 = vrot.slane %v554, 5
    %v557 = vsel %vm447, %v552, %v556
    %v558 = vshrl.u32 %v430, 16
    %v560 = vrot.slane %v558, 4
    %v561 = vor.u32 %v560, %v556
    %v562 = vrot.slane %v561, 4
    %v564 = vshll.u32 %v441, 16
    %v566 = vrot.slane %v564, 5
    %v567 = vsel %vm447, %v562, %v566
    %v569 = vshrl.u32 %v431, 16
    %v571 = vrot.slane %v569, 4
    %v572 = vshll.u32 %v431, 16
    %v574 = vrot.slane %v572, 5
    %v575 = vor.u32 %v571, %v574
    %v576 = vrot.slane %v575, 4
    %v578 = vshll.u32 %v432, 16
    %v580 = vrot.slane %v578, 5
    %v581 = vsel %vm447, %v576, %v580
    %v582 = vshrl.u32 %v432, 16
    %v584 = vrot.slane %v582, 4
    %v585 = vor.u32 %v584, %v580
    %v586 = vrot.slane %v585, 4
    %v588 = vshll.u32 %v442, 16
    %v590 = vrot.slane %v588, 5
    %v591 = vsel %vm447, %v586, %v590
    %v593 = vshrl.u32 %v433, 16
    %v595 = vrot.slane %v593, 4
    %v596 = vshll.u32 %v433, 16
    %v598 = vrot.slane %v596, 5
    %v599 = vor.u32 %v595, %v598
    %v600 = vrot.slane %v599, 4
    %v602 = vshll.u32 %v434, 16
    %v604 = vrot.slane %v602, 5
    %v605 = vsel %vm447, %v600, %v604
    %v606 = vshrl.u32 %v434, 16
    %v608 = vrot.slane %v606, 4
    %v609 = vor.u32 %v608, %v604
    %v610 = vrot.slane %v609, 4
    %v612 = vshll.u32 %v443, 16
    %v614 = vrot.slane %v612, 5
    %v615 = vsel %vm447, %v610, %v614
    %v617 = vshrl.u32 %v435, 16
    %v619 = vrot.slane %v617, 4
    %v620 = vshll.u32 %v435, 16
    %v622 = vrot.slane %v620, 5
    %v623 = vor.u32 %v619, %v622
    %v624 = vrot.slane %v623, 4
    %v626 = vshll.u32 %v436, 16
    %v628 = vrot.slane %v626, 5
    %v629 = vsel %vm447, %v624, %v628
    %v630 = vshrl.u32 %v436, 16
    %v632 = vrot.slane %v630, 4
    %v633 = vor.u32 %v632, %v628
    %v634 = vrot.slane %v633, 4
    %v636 = vshll.u32 %v444, 16
    %v638 = vrot.slane %v636, 5
    %v639 = vsel %vm447, %v634, %v638
    %v640 = vld [vmem:[#allocation2] sm:$0xe]
    %v641 = vld [vmem:[#allocation2 + $0xc] sm:$0xe]
    %v642 = vld [vmem:[#allocation2 + $0x18] sm:$0xe]
    %v643 = vld [vmem:[#allocation2 + $0x24] sm:$0xe]
    %v644 = vld [vmem:[#allocation2 + $0x30] sm:$0xe]
    %v645 = vld [vmem:[#allocation2 + $0x3c] sm:$0xe]
    %v646 = vld [vmem:[#allocation2 + $0x48] sm:$0xe]
    %v647 = vld [vmem:[#allocation2 + $0x54] sm:$0xe]
    %vm672 = vcmask 1042432
    %vm673 = vcmask 1046532
    %vm674 = vmor %vm672, %vm673
    %v675 = vrot.slane %v640, 5
    %v676 = vrot.slane %v675, 4
    %v677 = vrot.slane %v422, 5
    %v678 = vsel %vm674, %v676, %v677
    %v679 = vrot.slane %v677, 4
    %v680 = vrot.slane %v437, 5
    %v681 = vsel %vm674, %v679, %v680
    %v682 = vrot.slane %v641, 5
    %v683 = vrot.slane %v682, 4
    %v684 = vrot.slane %v424, 5
    %v685 = vsel %vm674, %v683, %v684
    %v686 = vrot.slane %v684, 4
    %v687 = vrot.slane %v438, 5
    %v688 = vsel %vm674, %v686, %v687
    %v689 = vrot.slane %v642, 5
    %v690 = vrot.slane %v689, 4
    %v691 = vrot.slane %v426, 5
    %v692 = vsel %vm674, %v690, %v691
    %v693 = vrot.slane %v691, 4
    %v694 = vrot.slane %v439, 5
    %v695 = vsel %vm674, %v693, %v694
    %v696 = vrot.slane %v643, 5
    %v697 = vrot.slane %v696, 4
    %v698 = vrot.slane %v428, 5
    %v699 = vsel %vm674, %v697, %v698
    %v700 = vrot.slane %v698, 4
    %v701 = vrot.slane %v440, 5
    %v702 = vsel %vm674, %v700, %v701
    %v703 = vrot.slane %v644, 5
    %v704 = vrot.slane %v703, 4
    %v705 = vrot.slane %v430, 5
    %v706 = vsel %vm674, %v704, %v705
    %v707 = vrot.slane %v705, 4
    %v708 = vrot.slane %v441, 5
    %v709 = vsel %vm674, %v707, %v708
    %v710 = vrot.slane %v645, 5
    %v711 = vrot.slane %v710, 4
    %v712 = vrot.slane %v432, 5
    %v713 = vsel %vm674, %v711, %v712
    %v714 = vrot.slane %v712, 4
    %v715 = vrot.slane %v442, 5
    %v716 = vsel %vm674, %v714, %v715
    %v717 = vrot.slane %v646, 5
    %v718 = vrot.slane %v717, 4
    %v719 = vrot.slane %v434, 5
    %v720 = vsel %vm674, %v718, %v719
    %v721 = vrot.slane %v719, 4
    %v722 = vrot.slane %v443, 5
    %v723 = vsel %vm674, %v721, %v722
    %v724 = vrot.slane %v647, 5
    %v725 = vrot.slane %v724, 4
    %v726 = vrot.slane %v436, 5
    %v727 = vsel %vm674, %v725, %v726
    %v728 = vrot.slane %v726, 4
    %v729 = vrot.slane %v444, 5
    %v730 = vsel %vm674, %v728, %v729
    %v731 = vld [vmem:[#allocation2 + $0x8] sm:$0x3]
    %v732 = vld [vmem:[#allocation2 + $0x14] sm:$0x3]
    %v733 = vld [vmem:[#allocation2 + $0x20] sm:$0x3]
    %v734 = vld [vmem:[#allocation2 + $0x2c] sm:$0x3]
    %v735 = vld [vmem:[#allocation2 + $0x38] sm:$0x3]
    %v736 = vld [vmem:[#allocation2 + $0x44] sm:$0x3]
    %v737 = vld [vmem:[#allocation2 + $0x50] sm:$0x3]
    %v738 = vld [vmem:[#allocation2 + $0x5c] sm:$0x3]
    %vm739 = vsmask.f32 2304
    %vm740 = vsmask.f32 6416
    %vm741 = vmor %vm739, %vm740
    %v743 = vshrl.u32 %v640, 16
    %v745 = vrot.slane %v743, 5
    %v746 = vshll.u32 %v640, 16
    %v748 = vrot.slane %v746, 6
    %v749 = vor.u32 %v745, %v748
    %v750 = vrot.slane %v749, 4
    %v751 = vrot.slane %v462, 5
    %v752 = vrot.slane %v458, 6
    %v753 = vor.u32 %v751, %v752
    %v754 = vsel %vm741, %v750, %v753
    %v755 = vrot.slane %v753, 4
    %v757 = vshrl.u32 %v731, 16
    %v759 = vrot.slane %v757, 5
    %v760 = vshll.u32 %v731, 16
    %v762 = vrot.slane %v760, 6
    %v763 = vor.u32 %v759, %v762
    %v764 = vsel %vm741, %v755, %v763
    %v766 = vshrl.u32 %v641, 16
    %v768 = vrot.slane %v766, 5
    %v769 = vshll.u32 %v641, 16
    %v771 = vrot.slane %v769, 6
    %v772 = vor.u32 %v768, %v771
    %v773 = vrot.slane %v772, 4
    %v774 = vrot.slane %v486, 5
    %v775 = vrot.slane %v482, 6
    %v776 = vor.u32 %v774, %v775
    %v777 = vsel %vm741, %v773, %v776
    %v778 = vrot.slane %v776, 4
    %v780 = vshrl.u32 %v732, 16
    %v782 = vrot.slane %v780, 5
    %v783 = vshll.u32 %v732, 16
    %v785 = vrot.slane %v783, 6
    %v786 = vor.u32 %v782, %v785
    %v787 = vsel %vm741, %v778, %v786
    %v789 = vshrl.u32 %v642, 16
    %v791 = vrot.slane %v789, 5
    %v792 = vshll.u32 %v642, 16
    %v794 = vrot.slane %v792, 6
    %v795 = vor.u32 %v791, %v794
    %v796 = vrot.slane %v795, 4
    %v797 = vrot.slane %v510, 5
    %v798 = vrot.slane %v506, 6
    %v799 = vor.u32 %v797, %v798
    %v800 = vsel %vm741, %v796, %v799
    %v801 = vrot.slane %v799, 4
    %v803 = vshrl.u32 %v733, 16
    %v805 = vrot.slane %v803, 5
    %v806 = vshll.u32 %v733, 16
    %v808 = vrot.slane %v806, 6
    %v809 = vor.u32 %v805, %v808
    %v810 = vsel %vm741, %v801, %v809
    %v812 = vshrl.u32 %v643, 16
    %v814 = vrot.slane %v812, 5
    %v815 = vshll.u32 %v643, 16
    %v817 = vrot.slane %v815, 6
    %v818 = vor.u32 %v814, %v817
    %v819 = vrot.slane %v818, 4
    %v820 = vrot.slane %v534, 5
    %v821 = vrot.slane %v530, 6
    %v822 = vor.u32 %v820, %v821
    %v823 = vsel %vm741, %v819, %v822
    %v824 = vrot.slane %v822, 4
    %v826 = vshrl.u32 %v734, 16
    %v828 = vrot.slane %v826, 5
    %v829 = vshll.u32 %v734, 16
    %v831 = vrot.slane %v829, 6
    %v832 = vor.u32 %v828, %v831
    %v833 = vsel %vm741, %v824, %v832
    %v835 = vshrl.u32 %v644, 16
    %v837 = vrot.slane %v835, 5
    %v838 = vshll.u32 %v644, 16
    %v840 = vrot.slane %v838, 6
    %v841 = vor.u32 %v837, %v840
    %v842 = vrot.slane %v841, 4
    %v843 = vrot.slane %v558, 5
    %v844 = vrot.slane %v554, 6
    %v845 = vor.u32 %v843, %v844
    %v846 = vsel %vm741, %v842, %v845
    %v847 = vrot.slane %v845, 4
    %v849 = vshrl.u32 %v735, 16
    %v851 = vrot.slane %v849, 5
    %v852 = vshll.u32 %v735, 16
    %v854 = vrot.slane %v852, 6
    %v855 = vor.u32 %v851, %v854
    %v856 = vsel %vm741, %v847, %v855
    %v858 = vshrl.u32 %v645, 16
    %v860 = vrot.slane %v858, 5
    %v861 = vshll.u32 %v645, 16
    %v863 = vrot.slane %v861, 6
    %v864 = vor.u32 %v860, %v863
    %v865 = vrot.slane %v864, 4
    %v866 = vrot.slane %v582, 5
    %v867 = vrot.slane %v578, 6
    %v868 = vor.u32 %v866, %v867
    %v869 = vsel %vm741, %v865, %v868
    %v870 = vrot.slane %v868, 4
    %v872 = vshrl.u32 %v736, 16
    %v874 = vrot.slane %v872, 5
    %v875 = vshll.u32 %v736, 16
    %v877 = vrot.slane %v875, 6
    %v878 = vor.u32 %v874, %v877
    %v879 = vsel %vm741, %v870, %v878
    %v881 = vshrl.u32 %v646, 16
    %v883 = vrot.slane %v881, 5
    %v884 = vshll.u32 %v646, 16
    %v886 = vrot.slane %v884, 6
    %v887 = vor.u32 %v883, %v886
    %v888 = vrot.slane %v887, 4
    %v889 = vrot.slane %v606, 5
    %v890 = vrot.slane %v602, 6
    %v891 = vor.u32 %v889, %v890
    %v892 = vsel %vm741, %v888, %v891
    %v893 = vrot.slane %v891, 4
    %v895 = vshrl.u32 %v737, 16
    %v897 = vrot.slane %v895, 5
    %v898 = vshll.u32 %v737, 16
    %v900 = vrot.slane %v898, 6
    %v901 = vor.u32 %v897, %v900
    %v902 = vsel %vm741, %v893, %v901
    %v904 = vshrl.u32 %v647, 16
    %v906 = vrot.slane %v904, 5
    %v907 = vshll.u32 %v647, 16
    %v909 = vrot.slane %v907, 6
    %v910 = vor.u32 %v906, %v909
    %v911 = vrot.slane %v910, 4
    %v912 = vrot.slane %v630, 5
    %v913 = vrot.slane %v626, 6
    %v914 = vor.u32 %v912, %v913
    %v915 = vsel %vm741, %v911, %v914
    %v916 = vrot.slane %v914, 4
    %v918 = vshrl.u32 %v738, 16
    %v920 = vrot.slane %v918, 5
    %v921 = vshll.u32 %v738, 16
    %v923 = vrot.slane %v921, 6
    %v924 = vor.u32 %v920, %v923
    %v925 = vsel %vm741, %v916, %v924
    %v926 = vld [vmem:[#allocation2] sm:$0xc]
    %v927 = vld [vmem:[#allocation2 + $0xc] sm:$0xc]
    %v928 = vld [vmem:[#allocation2 + $0x18] sm:$0xc]
    %v929 = vld [vmem:[#allocation2 + $0x24] sm:$0xc]
    %v930 = vld [vmem:[#allocation2 + $0x30] sm:$0xc]
    %v931 = vld [vmem:[#allocation2 + $0x3c] sm:$0xc]
    %v932 = vld [vmem:[#allocation2 + $0x48] sm:$0xc]
    %v933 = vld [vmem:[#allocation2 + $0x54] sm:$0xc]
    %vm950 = vcmask 1041408
    %vm951 = vcmask 1045508
    %vm952 = vmor %vm950, %vm951
    %v953 = vrot.slane %v926, 6
    %v954 = vrot.slane %v953, 4
    %v955 = vrot.slane %v422, 6
    %v956 = vsel %vm952, %v954, %v955
    %v957 = vrot.slane %v955, 4
    %v958 = vrot.slane %v731, 6
    %v959 = vsel %vm952, %v957, %v958
    %v960 = vrot.slane %v927, 6
    %v961 = vrot.slane %v960, 4
    %v962 = vrot.slane %v424, 6
    %v963 = vsel %vm952, %v961, %v962
    %v964 = vrot.slane %v962, 4
    %v965 = vrot.slane %v732, 6
    %v966 = vsel %vm952, %v964, %v965
    %v967 = vrot.slane %v928, 6
    %v968 = vrot.slane %v967, 4
    %v969 = vrot.slane %v426, 6
    %v970 = vsel %vm952, %v968, %v969
    %v971 = vrot.slane %v969, 4
    %v972 = vrot.slane %v733, 6
    %v973 = vsel %vm952, %v971, %v972
    %v974 = vrot.slane %v929, 6
    %v975 = vrot.slane %v974, 4
    %v976 = vrot.slane %v428, 6
    %v977 = vsel %vm952, %v975, %v976
    %v978 = vrot.slane %v976, 4
    %v979 = vrot.slane %v734, 6
    %v980 = vsel %vm952, %v978, %v979
    %v981 = vrot.slane %v930, 6
    %v982 = vrot.slane %v981, 4
    %v983 = vrot.slane %v430, 6
    %v984 = vsel %vm952, %v982, %v983
    %v985 = vrot.slane %v983, 4
    %v986 = vrot.slane %v735, 6
    %v987 = vsel %vm952, %v985, %v986
    %v988 = vrot.slane %v931, 6
    %v989 = vrot.slane %v988, 4
    %v990 = vrot.slane %v432, 6
    %v991 = vsel %vm952, %v989, %v990
    %v992 = vrot.slane %v990, 4
    %v993 = vrot.slane %v736, 6
    %v994 = vsel %vm952, %v992, %v993
    %v995 = vrot.slane %v932, 6
    %v996 = vrot.slane %v995, 4
    %v997 = vrot.slane %v434, 6
    %v998 = vsel %vm952, %v996, %v997
    %v999 = vrot.slane %v997, 4
    %v1000 = vrot.slane %v737, 6
    %v1001 = vsel %vm952, %v999, %v1000
    %v1002 = vrot.slane %v933, 6
    %v1003 = vrot.slane %v1002, 4
    %v1004 = vrot.slane %v436, 6
    %v1005 = vsel %vm952, %v1003, %v1004
    %v1006 = vrot.slane %v1004, 4
    %v1007 = vrot.slane %v738, 6
    %v1008 = vsel %vm952, %v1006, %v1007
    %v1009 = vld [vmem:[#allocation2 + $0x8] sm:$0x7]
    %v1010 = vld [vmem:[#allocation2 + $0x14] sm:$0x7]
    %v1011 = vld [vmem:[#allocation2 + $0x20] sm:$0x7]
    %v1012 = vld [vmem:[#allocation2 + $0x2c] sm:$0x7]
    %v1013 = vld [vmem:[#allocation2 + $0x38] sm:$0x7]
    %v1014 = vld [vmem:[#allocation2 + $0x44] sm:$0x7]
    %v1015 = vld [vmem:[#allocation2 + $0x50] sm:$0x7]
    %v1016 = vld [vmem:[#allocation2 + $0x5c] sm:$0x7]
    %vm1017 = vsmask.f32 1280
    %vm1018 = vsmask.f32 5392
    %vm1019 = vmor %vm1017, %vm1018
    %v1021 = vshrl.u32 %v926, 16
    %v1023 = vrot.slane %v1021, 6
    %v1024 = vshll.u32 %v926, 16
    %v1026 = vrot.slane %v1024, 7
    %v1027 = vor.u32 %v1023, %v1026
    %v1028 = vrot.slane %v1027, 4
    %v1029 = vrot.slane %v462, 6
    %v1030 = vrot.slane %v458, 7
    %v1031 = vor.u32 %v1029, %v1030
    %v1032 = vsel %vm1019, %v1028, %v1031
    %v1033 = vrot.slane %v1031, 4
    %v1035 = vshrl.u32 %v1009, 16
    %v1037 = vrot.slane %v1035, 6
    %v1038 = vshll.u32 %v1009, 16
    %v1040 = vrot.slane %v1038, 7
    %v1041 = vor.u32 %v1037, %v1040
    %v1042 = vsel %vm1019, %v1033, %v1041
    %v1044 = vshrl.u32 %v927, 16
    %v1046 = vrot.slane %v1044, 6
    %v1047 = vshll.u32 %v927, 16
    %v1049 = vrot.slane %v1047, 7
    %v1050 = vor.u32 %v1046, %v1049
    %v1051 = vrot.slane %v1050, 4
    %v1052 = vrot.slane %v486, 6
    %v1053 = vrot.slane %v482, 7
    %v1054 = vor.u32 %v1052, %v1053
    %v1055 = vsel %vm1019, %v1051, %v1054
    %v1056 = vrot.slane %v1054, 4
    %v1058 = vshrl.u32 %v1010, 16
    %v1060 = vrot.slane %v1058, 6
    %v1061 = vshll.u32 %v1010, 16
    %v1063 = vrot.slane %v1061, 7
    %v1064 = vor.u32 %v1060, %v1063
    %v1065 = vsel %vm1019, %v1056, %v1064
    %v1067 = vshrl.u32 %v928, 16
    %v1069 = vrot.slane %v1067, 6
    %v1070 = vshll.u32 %v928, 16
    %v1072 = vrot.slane %v1070, 7
    %v1073 = vor.u32 %v1069, %v1072
    %v1074 = vrot.slane %v1073, 4
    %v1075 = vrot.slane %v510, 6
    %v1076 = vrot.slane %v506, 7
    %v1077 = vor.u32 %v1075, %v1076
    %v1078 = vsel %vm1019, %v1074, %v1077
    %v1079 = vrot.slane %v1077, 4
    %v1081 = vshrl.u32 %v1011, 16
    %v1083 = vrot.slane %v1081, 6
    %v1084 = vshll.u32 %v1011, 16
    %v1086 = vrot.slane %v1084, 7
    %v1087 = vor.u32 %v1083, %v1086
    %v1088 = vsel %vm1019, %v1079, %v1087
    %v1090 = vshrl.u32 %v929, 16
    %v1092 = vrot.slane %v1090, 6
    %v1093 = vshll.u32 %v929, 16
    %v1095 = vrot.slane %v1093, 7
    %v1096 = vor.u32 %v1092, %v1095
    %v1097 = vrot.slane %v1096, 4
    %v1098 = vrot.slane %v534, 6
    %v1099 = vrot.slane %v530, 7
    %v1100 = vor.u32 %v1098, %v1099
    %v1101 = vsel %vm1019, %v1097, %v1100
    %v1102 = vrot.slane %v1100, 4
    %v1104 = vshrl.u32 %v1012, 16
    %v1106 = vrot.slane %v1104, 6
    %v1107 = vshll.u32 %v1012, 16
    %v1109 = vrot.slane %v1107, 7
    %v1110 = vor.u32 %v1106, %v1109
    %v1111 = vsel %vm1019, %v1102, %v1110
    %v1113 = vshrl.u32 %v930, 16
    %v1115 = vrot.slane %v1113, 6
    %v1116 = vshll.u32 %v930, 16
    %v1118 = vrot.slane %v1116, 7
    %v1119 = vor.u32 %v1115, %v1118
    %v1120 = vrot.slane %v1119, 4
    %v1121 = vrot.slane %v558, 6
    %v1122 = vrot.slane %v554, 7
    %v1123 = vor.u32 %v1121, %v1122
    %v1124 = vsel %vm1019, %v1120, %v1123
    %v1125 = vrot.slane %v1123, 4
    %v1127 = vshrl.u32 %v1013, 16
    %v1129 = vrot.slane %v1127, 6
    %v1130 = vshll.u32 %v1013, 16
    %v1132 = vrot.slane %v1130, 7
    %v1133 = vor.u32 %v1129, %v1132
    %v1134 = vsel %vm1019, %v1125, %v1133
    %v1136 = vshrl.u32 %v931, 16
    %v1138 = vrot.slane %v1136, 6
    %v1139 = vshll.u32 %v931, 16
    %v1141 = vrot.slane %v1139, 7
    %v1142 = vor.u32 %v1138, %v1141
    %v1143 = vrot.slane %v1142, 4
    %v1144 = vrot.slane %v582, 6
    %v1145 = vrot.slane %v578, 7
    %v1146 = vor.u32 %v1144, %v1145
    %v1147 = vsel %vm1019, %v1143, %v1146
    %v1148 = vrot.slane %v1146, 4
    %v1150 = vshrl.u32 %v1014, 16
    %v1152 = vrot.slane %v1150, 6
    %v1153 = vshll.u32 %v1014, 16
    %v1155 = vrot.slane %v1153, 7
    %v1156 = vor.u32 %v1152, %v1155
    %v1157 = vsel %vm1019, %v1148, %v1156
    %v1159 = vshrl.u32 %v932, 16
    %v1161 = vrot.slane %v1159, 6
    %v1162 = vshll.u32 %v932, 16
    %v1164 = vrot.slane %v1162, 7
    %v1165 = vor.u32 %v1161, %v1164
    %v1166 = vrot.slane %v1165, 4
    %v1167 = vrot.slane %v606, 6
    %v1168 = vrot.slane %v602, 7
    %v1169 = vor.u32 %v1167, %v1168
    %v1170 = vsel %vm1019, %v1166, %v1169
    %v1171 = vrot.slane %v1169, 4
    %v1173 = vshrl.u32 %v1015, 16
    %v1175 = vrot.slane %v1173, 6
    %v1176 = vshll.u32 %v1015, 16
    %v1178 = vrot.slane %v1176, 7
    %v1179 = vor.u32 %v1175, %v1178
    %v1180 = vsel %vm1019, %v1171, %v1179
    %v1182 = vshrl.u32 %v933, 16
    %v1184 = vrot.slane %v1182, 6
    %v1185 = vshll.u32 %v933, 16
    %v1187 = vrot.slane %v1185, 7
    %v1188 = vor.u32 %v1184, %v1187
    %v1189 = vrot.slane %v1188, 4
    %v1190 = vrot.slane %v630, 6
    %v1191 = vrot.slane %v626, 7
    %v1192 = vor.u32 %v1190, %v1191
    %v1193 = vsel %vm1019, %v1189, %v1192
    %v1194 = vrot.slane %v1192, 4
    %v1196 = vshrl.u32 %v1016, 16
    %v1198 = vrot.slane %v1196, 6
    %v1199 = vshll.u32 %v1016, 16
    %v1201 = vrot.slane %v1199, 7
    %v1202 = vor.u32 %v1198, %v1201
    %v1203 = vsel %vm1019, %v1194, %v1202
    %v1204 = vld [vmem:[#allocation2] sm:$0x8]
    %v1205 = vld [vmem:[#allocation2 + $0xc] sm:$0x8]
    %v1206 = vld [vmem:[#allocation2 + $0x18] sm:$0x8]
    %v1207 = vld [vmem:[#allocation2 + $0x24] sm:$0x8]
    %v1208 = vld [vmem:[#allocation2 + $0x30] sm:$0x8]
    %v1209 = vld [vmem:[#allocation2 + $0x3c] sm:$0x8]
    %v1210 = vld [vmem:[#allocation2 + $0x48] sm:$0x8]
    %v1211 = vld [vmem:[#allocation2 + $0x54] sm:$0x8]
    %vm1228 = vcmask 1040384
    %vm1229 = vcmask 1044484
    %vm1230 = vmor %vm1228, %vm1229
    %v1231 = vrot.slane %v1204, 7
    %v1232 = vrot.slane %v1231, 4
    %v1233 = vrot.slane %v422, 7
    %v1234 = vsel %vm1230, %v1232, %v1233
    %v1235 = vrot.slane %v1233, 4
    %v1236 = vrot.slane %v1009, 7
    %v1237 = vsel %vm1230, %v1235, %v1236
    %v1238 = vrot.slane %v1205, 7
    %v1239 = vrot.slane %v1238, 4
    %v1240 = vrot.slane %v424, 7
    %v1241 = vsel %vm1230, %v1239, %v1240
    %v1242 = vrot.slane %v1240, 4
    %v1243 = vrot.slane %v1010, 7
    %v1244 = vsel %vm1230, %v1242, %v1243
    %v1245 = vrot.slane %v1206, 7
    %v1246 = vrot.slane %v1245, 4
    %v1247 = vrot.slane %v426, 7
    %v1248 = vsel %vm1230, %v1246, %v1247
    %v1249 = vrot.slane %v1247, 4
    %v1250 = vrot.slane %v1011, 7
    %v1251 = vsel %vm1230, %v1249, %v1250
    %v1252 = vrot.slane %v1207, 7
    %v1253 = vrot.slane %v1252, 4
    %v1254 = vrot.slane %v428, 7
    %v1255 = vsel %vm1230, %v1253, %v1254
    %v1256 = vrot.slane %v1254, 4
    %v1257 = vrot.slane %v1012, 7
    %v1258 = vsel %vm1230, %v1256, %v1257
    %v1259 = vrot.slane %v1208, 7
    %v1260 = vrot.slane %v1259, 4
    %v1261 = vrot.slane %v430, 7
    %v1262 = vsel %vm1230, %v1260, %v1261
    %v1263 = vrot.slane %v1261, 4
    %v1264 = vrot.slane %v1013, 7
    %v1265 = vsel %vm1230, %v1263, %v1264
    %v1266 = vrot.slane %v1209, 7
    %v1267 = vrot.slane %v1266, 4
    %v1268 = vrot.slane %v432, 7
    %v1269 = vsel %vm1230, %v1267, %v1268
    %v1270 = vrot.slane %v1268, 4
    %v1271 = vrot.slane %v1014, 7
    %v1272 = vsel %vm1230, %v1270, %v1271
    %v1273 = vrot.slane %v1210, 7
    %v1274 = vrot.slane %v1273, 4
    %v1275 = vrot.slane %v434, 7
    %v1276 = vsel %vm1230, %v1274, %v1275
    %v1277 = vrot.slane %v1275, 4
    %v1278 = vrot.slane %v1015, 7
    %v1279 = vsel %vm1230, %v1277, %v1278
    %v1280 = vrot.slane %v1211, 7
    %v1281 = vrot.slane %v1280, 4
    %v1282 = vrot.slane %v436, 7
    %v1283 = vsel %vm1230, %v1281, %v1282
    %v1284 = vrot.slane %v1282, 4
    %v1285 = vrot.slane %v1016, 7
    %v1286 = vsel %vm1230, %v1284, %v1285
    %v1287 = vld [vmem:[#allocation2 + $0x8] sm:$0xf]
    %v1288 = vld [vmem:[#allocation2 + $0x14] sm:$0xf]
    %v1289 = vld [vmem:[#allocation2 + $0x20] sm:$0xf]
    %v1290 = vld [vmem:[#allocation2 + $0x2c] sm:$0xf]
    %v1291 = vld [vmem:[#allocation2 + $0x38] sm:$0xf]
    %v1292 = vld [vmem:[#allocation2 + $0x44] sm:$0xf]
    %v1293 = vld [vmem:[#allocation2 + $0x50] sm:$0xf]
    %v1294 = vld [vmem:[#allocation2 + $0x5c] sm:$0xf]
    %vm1295 = vsmask.f32 256
    %vm1296 = vsmask.f32 4368
    %vm1297 = vmor %vm1295, %vm1296
    %v1299 = vshrl.u32 %v1204, 16
    %v1301 = vrot.slane %v1299, 7
    %v1302 = vrot.slane %v1301, 4
    %v1303 = vrot.slane %v462, 7
    %v1304 = vor.u32 %v1303, %v458
    %v1305 = vsel %vm1297, %v1302, %v1304
    %v1306 = vrot.slane %v1303, 4
    %v1308 = vshrl.u32 %v1287, 16
    %v1310 = vrot.slane %v1308, 7
    %v1311 = vshll.u32 %v1287, 16
    %v1313 = vor.u32 %v1310, %v1311
    %v1314 = vsel %vm1297, %v1306, %v1313
    %v1316 = vshrl.u32 %v1205, 16
    %v1318 = vrot.slane %v1316, 7
    %v1319 = vrot.slane %v1318, 4
    %v1320 = vrot.slane %v486, 7
    %v1321 = vor.u32 %v1320, %v482
    %v1322 = vsel %vm1297, %v1319, %v1321
    %v1323 = vrot.slane %v1320, 4
    %v1325 = vshrl.u32 %v1288, 16
    %v1327 = vrot.slane %v1325, 7
    %v1328 = vshll.u32 %v1288, 16
    %v1330 = vor.u32 %v1327, %v1328
    %v1331 = vsel %vm1297, %v1323, %v1330
    %v1333 = vshrl.u32 %v1206, 16
    %v1335 = vrot.slane %v1333, 7
    %v1336 = vrot.slane %v1335, 4
    %v1337 = vrot.slane %v510, 7
    %v1338 = vor.u32 %v1337, %v506
    %v1339 = vsel %vm1297, %v1336, %v1338
    %v1340 = vrot.slane %v1337, 4
    %v1342 = vshrl.u32 %v1289, 16
    %v1344 = vrot.slane %v1342, 7
    %v1345 = vshll.u32 %v1289, 16
    %v1347 = vor.u32 %v1344, %v1345
    %v1348 = vsel %vm1297, %v1340, %v1347
    %v1350 = vshrl.u32 %v1207, 16
    %v1352 = vrot.slane %v1350, 7
    %v1353 = vrot.slane %v1352, 4
    %v1354 = vrot.slane %v534, 7
    %v1355 = vor.u32 %v1354, %v530
    %v1356 = vsel %vm1297, %v1353, %v1355
    %v1357 = vrot.slane %v1354, 4
    %v1359 = vshrl.u32 %v1290, 16
    %v1361 = vrot.slane %v1359, 7
    %v1362 = vshll.u32 %v1290, 16
    %v1364 = vor.u32 %v1361, %v1362
    %v1365 = vsel %vm1297, %v1357, %v1364
    %v1367 = vshrl.u32 %v1208, 16
    %v1369 = vrot.slane %v1367, 7
    %v1370 = vrot.slane %v1369, 4
    %v1371 = vrot.slane %v558, 7
    %v1372 = vor.u32 %v1371, %v554
    %v1373 = vsel %vm1297, %v1370, %v1372
    %v1374 = vrot.slane %v1371, 4
    %v1376 = vshrl.u32 %v1291, 16
    %v1378 = vrot.slane %v1376, 7
    %v1379 = vshll.u32 %v1291, 16
    %v1381 = vor.u32 %v1378, %v1379
    %v1382 = vsel %vm1297, %v1374, %v1381
    %v1384 = vshrl.u32 %v1209, 16
    %v1386 = vrot.slane %v1384, 7
    %v1387 = vrot.slane %v1386, 4
    %v1388 = vrot.slane %v582, 7
    %v1389 = vor.u32 %v1388, %v578
    %v1390 = vsel %vm1297, %v1387, %v1389
    %v1391 = vrot.slane %v1388, 4
    %v1393 = vshrl.u32 %v1292, 16
    %v1395 = vrot.slane %v1393, 7
    %v1396 = vshll.u32 %v1292, 16
    %v1398 = vor.u32 %v1395, %v1396
    %v1399 = vsel %vm1297, %v1391, %v1398
    %v1401 = vshrl.u32 %v1210, 16
    %v1403 = vrot.slane %v1401, 7
    %v1404 = vrot.slane %v1403, 4
    %v1405 = vrot.slane %v606, 7
    %v1406 = vor.u32 %v1405, %v602
    %v1407 = vsel %vm1297, %v1404, %v1406
    %v1408 = vrot.slane %v1405, 4
    %v1410 = vshrl.u32 %v1293, 16
    %v1412 = vrot.slane %v1410, 7
    %v1413 = vshll.u32 %v1293, 16
    %v1415 = vor.u32 %v1412, %v1413
    %v1416 = vsel %vm1297, %v1408, %v1415
    %v1418 = vshrl.u32 %v1211, 16
    %v1420 = vrot.slane %v1418, 7
    %v1421 = vrot.slane %v1420, 4
    %v1422 = vrot.slane %v630, 7
    %v1423 = vor.u32 %v1422, %v626
    %v1424 = vsel %vm1297, %v1421, %v1423
    %v1425 = vrot.slane %v1422, 4
    %v1427 = vshrl.u32 %v1294, 16
    %v1429 = vrot.slane %v1427, 7
    %v1430 = vshll.u32 %v1294, 16
    %v1432 = vor.u32 %v1429, %v1430
    %v1433 = vsel %vm1297, %v1425, %v1432
    %v1442 = vunpack.c.l.b16 %v421
    %v1443 = vunpack.c.l.b16 %v422
    %v1444 = vunpack.c.l.b16 %v423
    %v1445 = vunpack.c.l.b16 %v424
    %v1446 = vunpack.c.l.b16 %v425
    %v1447 = vunpack.c.l.b16 %v426
    %v1448 = vunpack.c.l.b16 %v427
    %v1449 = vunpack.c.l.b16 %v428
    %v1450 = vunpack.c.l.b16 %v429
    %v1451 = vunpack.c.l.b16 %v430
    %v1452 = vunpack.c.l.b16 %v431
    %v1453 = vunpack.c.l.b16 %v432
    %v1454 = vunpack.c.l.b16 %v433
    %v1455 = vunpack.c.l.b16 %v434
    %v1456 = vunpack.c.l.b16 %v435
    %v1457 = vunpack.c.l.b16 %v436
    %v1458 = vpack.c.b16 %v1443, %v1442
    %v1459 = vpack.c.b16 %v1445, %v1444
    %v1460 = vpack.c.b16 %v1447, %v1446
    %v1461 = vpack.c.b16 %v1449, %v1448
    %v1462 = vpack.c.b16 %v1451, %v1450
    %v1463 = vpack.c.b16 %v1453, %v1452
    %v1464 = vpack.c.b16 %v1455, %v1454
    %v1465 = vpack.c.b16 %v1457, %v1456
    %v1466 = vunpack.c.l.b16 %v461
    %v1467 = vunpack.c.l.b16 %v471
    %v1468 = vunpack.c.l.b16 %v485
    %v1469 = vunpack.c.l.b16 %v495
    %v1470 = vunpack.c.l.b16 %v509
    %v1471 = vunpack.c.l.b16 %v519
    %v1472 = vunpack.c.l.b16 %v533
    %v1473 = vunpack.c.l.b16 %v543
    %v1474 = vunpack.c.l.b16 %v557
    %v1475 = vunpack.c.l.b16 %v567
    %v1476 = vunpack.c.l.b16 %v581
    %v1477 = vunpack.c.l.b16 %v591
    %v1478 = vunpack.c.l.b16 %v605
    %v1479 = vunpack.c.l.b16 %v615
    %v1480 = vunpack.c.l.b16 %v629
    %v1481 = vunpack.c.l.b16 %v639
    %v1482 = vpack.c.b16 %v1467, %v1466
    %v1483 = vpack.c.b16 %v1469, %v1468
    %v1484 = vpack.c.b16 %v1471, %v1470
    %v1485 = vpack.c.b16 %v1473, %v1472
    %v1486 = vpack.c.b16 %v1475, %v1474
    %v1487 = vpack.c.b16 %v1477, %v1476
    %v1488 = vpack.c.b16 %v1479, %v1478
    %v1489 = vpack.c.b16 %v1481, %v1480
    %1490 = vrot.lane.b32.xlu0 %v1482, 16
    %v1491 = vpop.permute.xlu0 %1490
    %1492 = vrot.lane.b32.xlu0 %v1483, 16
    %v1493 = vpop.permute.xlu0 %1492
    %1494 = vrot.lane.b32.xlu0 %v1484, 16
    %v1495 = vpop.permute.xlu0 %1494
    %1496 = vrot.lane.b32.xlu0 %v1485, 16
    %v1497 = vpop.permute.xlu0 %1496
    %1498 = vrot.lane.b32.xlu0 %v1486, 16
    %v1499 = vpop.permute.xlu0 %1498
    %1500 = vrot.lane.b32.xlu0 %v1487, 16
    %v1501 = vpop.permute.xlu0 %1500
    %1502 = vrot.lane.b32.xlu0 %v1488, 16
    %v1503 = vpop.permute.xlu0 %1502
    %1504 = vrot.lane.b32.xlu0 %v1489, 16
    %v1505 = vpop.permute.xlu0 %1504
    %v1506 = vunpack.c.l.b16 %v678
    %v1507 = vunpack.c.l.b16 %v681
    %v1508 = vunpack.c.l.b16 %v685
    %v1509 = vunpack.c.l.b16 %v688
    %v1510 = vunpack.c.l.b16 %v692
    %v1511 = vunpack.c.l.b16 %v695
    %v1512 = vunpack.c.l.b16 %v699
    %v1513 = vunpack.c.l.b16 %v702
    %v1514 = vunpack.c.l.b16 %v706
    %v1515 = vunpack.c.l.b16 %v709
    %v1516 = vunpack.c.l.b16 %v713
    %v1517 = vunpack.c.l.b16 %v716
    %v1518 = vunpack.c.l.b16 %v720
    %v1519 = vunpack.c.l.b16 %v723
    %v1520 = vunpack.c.l.b16 %v727
    %v1521 = vunpack.c.l.b16 %v730
    %v1522 = vpack.c.b16 %v1507, %v1506
    %v1523 = vpack.c.b16 %v1509, %v1508
    %v1524 = vpack.c.b16 %v1511, %v1510
    %v1525 = vpack.c.b16 %v1513, %v1512
    %v1526 = vpack.c.b16 %v1515, %v1514
    %v1527 = vpack.c.b16 %v1517, %v1516
    %v1528 = vpack.c.b16 %v1519, %v1518
    %v1529 = vpack.c.b16 %v1521, %v1520
    %1530 = vrot.lane.b32.xlu0 %v1522, 32
    %v1531 = vpop.permute.xlu0 %1530
    %1532 = vrot.lane.b32.xlu0 %v1523, 32
    %v1533 = vpop.permute.xlu0 %1532
    %1534 = vrot.lane.b32.xlu0 %v1524, 32
    %v1535 = vpop.permute.xlu0 %1534
    %1536 = vrot.lane.b32.xlu0 %v1525, 32
    %v1537 = vpop.permute.xlu0 %1536
    %1538 = vrot.lane.b32.xlu0 %v1526, 32
    %v1539 = vpop.permute.xlu0 %1538
    %1540 = vrot.lane.b32.xlu0 %v1527, 32
    %v1541 = vpop.permute.xlu0 %1540
    %1542 = vrot.lane.b32.xlu0 %v1528, 32
    %v1543 = vpop.permute.xlu0 %1542
    %1544 = vrot.lane.b32.xlu0 %v1529, 32
    %v1545 = vpop.permute.xlu0 %1544
    %v1546 = vunpack.c.l.b16 %v754
    %v1547 = vunpack.c.l.b16 %v764
    %v1548 = vunpack.c.l.b16 %v777
    %v1549 = vunpack.c.l.b16 %v787
    %v1550 = vunpack.c.l.b16 %v800
    %v1551 = vunpack.c.l.b16 %v810
    %v1552 = vunpack.c.l.b16 %v823
    %v1553 = vunpack.c.l.b16 %v833
    %v1554 = vunpack.c.l.b16 %v846
    %v1555 = vunpack.c.l.b16 %v856
    %v1556 = vunpack.c.l.b16 %v869
    %v1557 = vunpack.c.l.b16 %v879
    %v1558 = vunpack.c.l.b16 %v892
    %v1559 = vunpack.c.l.b16 %v902
    %v1560 = vunpack.c.l.b16 %v915
    %v1561 = vunpack.c.l.b16 %v925
    %v1562 = vpack.c.b16 %v1547, %v1546
    %v1563 = vpack.c.b16 %v1549, %v1548
    %v1564 = vpack.c.b16 %v1551, %v1550
    %v1565 = vpack.c.b16 %v1553, %v1552
    %v1566 = vpack.c.b16 %v1555, %v1554
    %v1567 = vpack.c.b16 %v1557, %v1556
    %v1568 = vpack.c.b16 %v1559, %v1558
    %v1569 = vpack.c.b16 %v1561, %v1560
    %1570 = vrot.lane.b32.xlu0 %v1562, 48
    %v1571 = vpop.permute.xlu0 %1570
    %1572 = vrot.lane.b32.xlu0 %v1563, 48
    %v1573 = vpop.permute.xlu0 %1572
    %1574 = vrot.lane.b32.xlu0 %v1564, 48
    %v1575 = vpop.permute.xlu0 %1574
    %1576 = vrot.lane.b32.xlu0 %v1565, 48
    %v1577 = vpop.permute.xlu0 %1576
    %1578 = vrot.lane.b32.xlu0 %v1566, 48
    %v1579 = vpop.permute.xlu0 %1578
    %1580 = vrot.lane.b32.xlu0 %v1567, 48
    %v1581 = vpop.permute.xlu0 %1580
    %1582 = vrot.lane.b32.xlu0 %v1568, 48
    %v1583 = vpop.permute.xlu0 %1582
    %1584 = vrot.lane.b32.xlu0 %v1569, 48
    %v1585 = vpop.permute.xlu0 %1584
    %v1586 = vunpack.c.l.b16 %v956
    %v1587 = vunpack.c.l.b16 %v959
    %v1588 = vunpack.c.l.b16 %v963
    %v1589 = vunpack.c.l.b16 %v966
    %v1590 = vunpack.c.l.b16 %v970
    %v1591 = vunpack.c.l.b16 %v973
    %v1592 = vunpack.c.l.b16 %v977
    %v1593 = vunpack.c.l.b16 %v980
    %v1594 = vunpack.c.l.b16 %v984
    %v1595 = vunpack.c.l.b16 %v987
    %v1596 = vunpack.c.l.b16 %v991
    %v1597 = vunpack.c.l.b16 %v994
    %v1598 = vunpack.c.l.b16 %v998
    %v1599 = vunpack.c.l.b16 %v1001
    %v1600 = vunpack.c.l.b16 %v1005
    %v1601 = vunpack.c.l.b16 %v1008
    %v1602 = vpack.c.b16 %v1587, %v1586
    %v1603 = vpack.c.b16 %v1589, %v1588
    %v1604 = vpack.c.b16 %v1591, %v1590
    %v1605 = vpack.c.b16 %v1593, %v1592
    %v1606 = vpack.c.b16 %v1595, %v1594
    %v1607 = vpack.c.b16 %v1597, %v1596
    %v1608 = vpack.c.b16 %v1599, %v1598
    %v1609 = vpack.c.b16 %v1601, %v1600
    %1610 = vrot.lane.b32.xlu0 %v1602, 64
    %v1611 = vpop.permute.xlu0 %1610
    %1612 = vrot.lane.b32.xlu0 %v1603, 64
    %v1613 = vpop.permute.xlu0 %1612
    %1614 = vrot.lane.b32.xlu0 %v1604, 64
    %v1615 = vpop.permute.xlu0 %1614
    %1616 = vrot.lane.b32.xlu0 %v1605, 64
    %v1617 = vpop.permute.xlu0 %1616
    %1618 = vrot.lane.b32.xlu0 %v1606, 64
    %v1619 = vpop.permute.xlu0 %1618
    %1620 = vrot.lane.b32.xlu0 %v1607, 64
    %v1621 = vpop.permute.xlu0 %1620
    %1622 = vrot.lane.b32.xlu0 %v1608, 64
    %v1623 = vpop.permute.xlu0 %1622
    %1624 = vrot.lane.b32.xlu0 %v1609, 64
    %v1625 = vpop.permute.xlu0 %1624
    %v1626 = vunpack.c.l.b16 %v1032
    %v1627 = vunpack.c.l.b16 %v1042
    %v1628 = vunpack.c.l.b16 %v1055
    %v1629 = vunpack.c.l.b16 %v1065
    %v1630 = vunpack.c.l.b16 %v1078
    %v1631 = vunpack.c.l.b16 %v1088
    %v1632 = vunpack.c.l.b16 %v1101
    %v1633 = vunpack.c.l.b16 %v1111
    %v1634 = vunpack.c.l.b16 %v1124
    %v1635 = vunpack.c.l.b16 %v1134
    %v1636 = vunpack.c.l.b16 %v1147
    %v1637 = vunpack.c.l.b16 %v1157
    %v1638 = vunpack.c.l.b16 %v1170
    %v1639 = vunpack.c.l.b16 %v1180
    %v1640 = vunpack.c.l.b16 %v1193
    %v1641 = vunpack.c.l.b16 %v1203
    %v1642 = vpack.c.b16 %v1627, %v1626
    %v1643 = vpack.c.b16 %v1629, %v1628
    %v1644 = vpack.c.b16 %v1631, %v1630
    %v1645 = vpack.c.b16 %v1633, %v1632
    %v1646 = vpack.c.b16 %v1635, %v1634
    %v1647 = vpack.c.b16 %v1637, %v1636
    %v1648 = vpack.c.b16 %v1639, %v1638
    %v1649 = vpack.c.b16 %v1641, %v1640
    %1650 = vrot.lane.b32.xlu0 %v1642, 80
    %v1651 = vpop.permute.xlu0 %1650
    %1652 = vrot.lane.b32.xlu0 %v1643, 80
    %v1653 = vpop.permute.xlu0 %1652
    %1654 = vrot.lane.b32.xlu0 %v1644, 80
    %v1655 = vpop.permute.xlu0 %1654
    %1656 = vrot.lane.b32.xlu0 %v1645, 80
    %v1657 = vpop.permute.xlu0 %1656
    %1658 = vrot.lane.b32.xlu0 %v1646, 80
    %v1659 = vpop.permute.xlu0 %1658
    %1660 = vrot.lane.b32.xlu0 %v1647, 80
    %v1661 = vpop.permute.xlu0 %1660
    %1662 = vrot.lane.b32.xlu0 %v1648, 80
    %v1663 = vpop.permute.xlu0 %1662
    %1664 = vrot.lane.b32.xlu0 %v1649, 80
    %v1665 = vpop.permute.xlu0 %1664
    %v1666 = vunpack.c.l.b16 %v1234
    %v1667 = vunpack.c.l.b16 %v1237
    %v1668 = vunpack.c.l.b16 %v1241
    %v1669 = vunpack.c.l.b16 %v1244
    %v1670 = vunpack.c.l.b16 %v1248
    %v1671 = vunpack.c.l.b16 %v1251
    %v1672 = vunpack.c.l.b16 %v1255
    %v1673 = vunpack.c.l.b16 %v1258
    %v1674 = vunpack.c.l.b16 %v1262
    %v1675 = vunpack.c.l.b16 %v1265
    %v1676 = vunpack.c.l.b16 %v1269
    %v1677 = vunpack.c.l.b16 %v1272
    %v1678 = vunpack.c.l.b16 %v1276
    %v1679 = vunpack.c.l.b16 %v1279
    %v1680 = vunpack.c.l.b16 %v1283
    %v1681 = vunpack.c.l.b16 %v1286
    %v1682 = vpack.c.b16 %v1667, %v1666
    %v1683 = vpack.c.b16 %v1669, %v1668
    %v1684 = vpack.c.b16 %v1671, %v1670
    %v1685 = vpack.c.b16 %v1673, %v1672
    %v1686 = vpack.c.b16 %v1675, %v1674
    %v1687 = vpack.c.b16 %v1677, %v1676
    %v1688 = vpack.c.b16 %v1679, %v1678
    %v1689 = vpack.c.b16 %v1681, %v1680
    %1690 = vrot.lane.b32.xlu0 %v1682, 96
    %v1691 = vpop.permute.xlu0 %1690
    %1692 = vrot.lane.b32.xlu0 %v1683, 96
    %v1693 = vpop.permute.xlu0 %1692
    %1694 = vrot.lane.b32.xlu0 %v1684, 96
    %v1695 = vpop.permute.xlu0 %1694
    %1696 = vrot.lane.b32.xlu0 %v1685, 96
    %v1697 = vpop.permute.xlu0 %1696
    %1698 = vrot.lane.b32.xlu0 %v1686, 96
    %v1699 = vpop.permute.xlu0 %1698
    %1700 = vrot.lane.b32.xlu0 %v1687, 96
    %v1701 = vpop.permute.xlu0 %1700
    %1702 = vrot.lane.b32.xlu0 %v1688, 96
    %v1703 = vpop.permute.xlu0 %1702
    %1704 = vrot.lane.b32.xlu0 %v1689, 96
    %v1705 = vpop.permute.xlu0 %1704
    %v1706 = vunpack.c.l.b16 %v1305
    %v1707 = vunpack.c.l.b16 %v1314
    %v1708 = vunpack.c.l.b16 %v1322
    %v1709 = vunpack.c.l.b16 %v1331
    %v1710 = vunpack.c.l.b16 %v1339
    %v1711 = vunpack.c.l.b16 %v1348
    %v1712 = vunpack.c.l.b16 %v1356
    %v1713 = vunpack.c.l.b16 %v1365
    %v1714 = vunpack.c.l.b16 %v1373
    %v1715 = vunpack.c.l.b16 %v1382
    %v1716 = vunpack.c.l.b16 %v1390
    %v1717 = vunpack.c.l.b16 %v1399
    %v1718 = vunpack.c.l.b16 %v1407
    %v1719 = vunpack.c.l.b16 %v1416
    %v1720 = vunpack.c.l.b16 %v1424
    %v1721 = vunpack.c.l.b16 %v1433
    %v1722 = vpack.c.b16 %v1707, %v1706
    %v1723 = vpack.c.b16 %v1709, %v1708
    %v1724 = vpack.c.b16 %v1711, %v1710
    %v1725 = vpack.c.b16 %v1713, %v1712
    %v1726 = vpack.c.b16 %v1715, %v1714
    %v1727 = vpack.c.b16 %v1717, %v1716
    %v1728 = vpack.c.b16 %v1719, %v1718
    %v1729 = vpack.c.b16 %v1721, %v1720
    %1730 = vrot.lane.b32.xlu0 %v1722, 112
    %v1731 = vpop.permute.xlu0 %1730
    %1732 = vrot.lane.b32.xlu0 %v1723, 112
    %v1733 = vpop.permute.xlu0 %1732
    %1734 = vrot.lane.b32.xlu0 %v1724, 112
    %v1735 = vpop.permute.xlu0 %1734
    %1736 = vrot.lane.b32.xlu0 %v1725, 112
    %v1737 = vpop.permute.xlu0 %1736
    %1738 = vrot.lane.b32.xlu0 %v1726, 112
    %v1739 = vpop.permute.xlu0 %1738
    %1740 = vrot.lane.b32.xlu0 %v1727, 112
    %v1741 = vpop.permute.xlu0 %1740
    %1742 = vrot.lane.b32.xlu0 %v1728, 112
    %v1743 = vpop.permute.xlu0 %1742
    %1744 = vrot.lane.b32.xlu0 %v1729, 112
    %v1745 = vpop.permute.xlu0 %1744
    %vm1746 = vcmask 130048
    %v1749 = vsel %vm1746, %v1458, %v1491
    %v1752 = vsel %vm1746, %v1459, %v1493
    %v1755 = vsel %vm1746, %v1460, %v1495
    %v1758 = vsel %vm1746, %v1461, %v1497
    %v1761 = vsel %vm1746, %v1462, %v1499
    %v1764 = vsel %vm1746, %v1463, %v1501
    %v1767 = vsel %vm1746, %v1464, %v1503
    %v1770 = vsel %vm1746, %v1465, %v1505
    %vm1771 = vcmask 261120
    %v1773 = vsel %vm1771, %v1749, %v1531
    %v1775 = vsel %vm1771, %v1752, %v1533
    %v1777 = vsel %vm1771, %v1755, %v1535
    %v1779 = vsel %vm1771, %v1758, %v1537
    %v1781 = vsel %vm1771, %v1761, %v1539
    %v1783 = vsel %vm1771, %v1764, %v1541
    %v1785 = vsel %vm1771, %v1767, %v1543
    %v1787 = vsel %vm1771, %v1770, %v1545
    %vm1788 = vcmask 392192
    %v1790 = vsel %vm1788, %v1773, %v1571
    %v1792 = vsel %vm1788, %v1775, %v1573
    %v1794 = vsel %vm1788, %v1777, %v1575
    %v1796 = vsel %vm1788, %v1779, %v1577
    %v1798 = vsel %vm1788, %v1781, %v1579
    %v1800 = vsel %vm1788, %v1783, %v1581
    %v1802 = vsel %vm1788, %v1785, %v1583
    %v1804 = vsel %vm1788, %v1787, %v1585
    %vm1805 = vcmask 523264
    %v1807 = vsel %vm1805, %v1790, %v1611
    %v1809 = vsel %vm1805, %v1792, %v1613
    %v1811 = vsel %vm1805, %v1794, %v1615
    %v1813 = vsel %vm1805, %v1796, %v1617
    %v1815 = vsel %vm1805, %v1798, %v1619
    %v1817 = vsel %vm1805, %v1800, %v1621
    %v1819 = vsel %vm1805, %v1802, %v1623
    %v1821 = vsel %vm1805, %v1804, %v1625
    %vm1822 = vcmask 654336
    %v1824 = vsel %vm1822, %v1807, %v1651
    %v1826 = vsel %vm1822, %v1809, %v1653
    %v1828 = vsel %vm1822, %v1811, %v1655
    %v1830 = vsel %vm1822, %v1813, %v1657
    %v1832 = vsel %vm1822, %v1815, %v1659
    %v1834 = vsel %vm1822, %v1817, %v1661
    %v1836 = vsel %vm1822, %v1819, %v1663
    %v1838 = vsel %vm1822, %v1821, %v1665
    %vm1839 = vcmask 785408
    %v1841 = vsel %vm1839, %v1824, %v1691
    %v1843 = vsel %vm1839, %v1826, %v1693
    %v1845 = vsel %vm1839, %v1828, %v1695
    %v1847 = vsel %vm1839, %v1830, %v1697
    %v1849 = vsel %vm1839, %v1832, %v1699
    %v1851 = vsel %vm1839, %v1834, %v1701
    %v1853 = vsel %vm1839, %v1836, %v1703
    %v1855 = vsel %vm1839, %v1838, %v1705
    %vm1856 = vcmask 916480
    %v1858 = vsel %vm1856, %v1841, %v1731
    %v1861 = vsel %vm1856, %v1843, %v1733
    %v1864 = vsel %vm1856, %v1845, %v1735
    %v1867 = vsel %vm1856, %v1847, %v1737
    %v1870 = vsel %vm1856, %v1849, %v1739
    %v1873 = vsel %vm1856, %v1851, %v1741
    %v1876 = vsel %vm1856, %v1853, %v1743
    %v1879 = vsel %vm1856, %v1855, %v1745
    %v1881 = vld [vmem:[#allocation6] sm:$0xff]
    %v1882 = vld [vmem:[#allocation6 + $0x8] sm:$0xff]
    %v1883 = vld [vmem:[#allocation6 + $0x10] sm:$0xff]
    %v1884 = vld [vmem:[#allocation6 + $0x18] sm:$0xff]
    %v1885 = vld [vmem:[#allocation6 + $0x20] sm:$0xff]
    %v1886 = vld [vmem:[#allocation6 + $0x28] sm:$0xff]
    %v1887 = vld [vmem:[#allocation6 + $0x30] sm:$0xff]
    %v1888 = vld [vmem:[#allocation6 + $0x38] sm:$0xff]
    %v1889 = vld [vmem:[#allocation6 + $0x40] sm:$0xff]
    %v1890 = vld [vmem:[#allocation6 + $0x48] sm:$0xff]
    %v1891 = vld [vmem:[#allocation6 + $0x50] sm:$0xff]
    %v1892 = vld [vmem:[#allocation6 + $0x58] sm:$0xff]
    %v1893 = vld [vmem:[#allocation6 + $0x60] sm:$0xff]
    %v1894 = vld [vmem:[#allocation6 + $0x68] sm:$0xff]
    %v1895 = vld [vmem:[#allocation6 + $0x70] sm:$0xff]
    %v1896 = vld [vmem:[#allocation6 + $0x78] sm:$0xff]
    %v1897 = vld [vmem:[%s2] sm:$0x3]
    %v1899 = vlaneseq
    %v1900 = vshrl.u32 %v1899, 7
    %v1901 = vsub.s32 0, %v1900
    %v1902 = vrot.slane %v1897, %v1901
    %v1903 = vlaneseq
    %v1904 = vshrl.u32 %v1903, 7
    %v1905 = vsub.s32 1, %v1904
    %v1906 = vrot.slane %v1897, %v1905
    %v1925 = vunpack.c.l.b16 %v1881
    %v1926 = vunpack.c.h.b16 %v1881
    %v1927 = vunpack.c.l.b16 %v1882
    %v1928 = vunpack.c.h.b16 %v1882
    %v1929 = vunpack.c.l.b16 %v1883
    %v1930 = vunpack.c.h.b16 %v1883
    %v1931 = vunpack.c.l.b16 %v1884
    %v1932 = vunpack.c.h.b16 %v1884
    %v1933 = vunpack.c.l.b16 %v1885
    %v1934 = vunpack.c.h.b16 %v1885
    %v1935 = vunpack.c.l.b16 %v1886
    %v1936 = vunpack.c.h.b16 %v1886
    %v1937 = vunpack.c.l.b16 %v1887
    %v1938 = vunpack.c.h.b16 %v1887
    %v1939 = vunpack.c.l.b16 %v1888
    %v1940 = vunpack.c.h.b16 %v1888
    %v1941 = vunpack.c.l.b16 %v1889
    %v1942 = vunpack.c.h.b16 %v1889
    %v1943 = vunpack.c.l.b16 %v1890
    %v1944 = vunpack.c.h.b16 %v1890
    %v1945 = vunpack.c.l.b16 %v1891
    %v1946 = vunpack.c.h.b16 %v1891
    %v1947 = vunpack.c.l.b16 %v1892
    %v1948 = vunpack.c.h.b16 %v1892
    %v1949 = vunpack.c.l.b16 %v1893
    %v1950 = vunpack.c.h.b16 %v1893
    %v1951 = vunpack.c.l.b16 %v1894
    %v1952 = vunpack.c.h.b16 %v1894
    %v1953 = vunpack.c.l.b16 %v1895
    %v1954 = vunpack.c.h.b16 %v1895
    %v1955 = vunpack.c.l.b16 %v1896
    %v1956 = vunpack.c.h.b16 %v1896
    %v1957 = vpack.c.b16 %v1927, %v1925
    %v1958 = vpack.c.b16 %v1928, %v1926
    %v1959 = vpack.c.b16 %v1931, %v1929
    %v1960 = vpack.c.b16 %v1932, %v1930
    %v1961 = vpack.c.b16 %v1935, %v1933
    %v1962 = vpack.c.b16 %v1936, %v1934
    %v1963 = vpack.c.b16 %v1939, %v1937
    %v1964 = vpack.c.b16 %v1940, %v1938
    %v1965 = vpack.c.b16 %v1943, %v1941
    %v1966 = vpack.c.b16 %v1944, %v1942
    %v1967 = vpack.c.b16 %v1947, %v1945
    %v1968 = vpack.c.b16 %v1948, %v1946
    %v1969 = vpack.c.b16 %v1951, %v1949
    %v1970 = vpack.c.b16 %v1952, %v1950
    %v1971 = vpack.c.b16 %v1955, %v1953
    %v1972 = vpack.c.b16 %v1956, %v1954
    %1989 = vmatprep.subr.bf16.mxu0 %v1972
    %1990 = vmatpush1.bf16.msra.mxu0 %v1971
    %1991 = vmatprep.subr.bf16.mxu0 %v1970
    %1992 = vmatpush1.bf16.msra.mxu0 %v1969
    %1993 = vmatprep.subr.bf16.mxu0 %v1968
    %1994 = vmatpush1.bf16.msra.mxu0 %v1967
    %1995 = vmatprep.subr.bf16.mxu0 %v1966
    %1996 = vmatpush1.bf16.msra.mxu0 %v1965
    %1997 = vmatprep.subr.bf16.mxu0 %v1964
    %1998 = vmatpush1.bf16.msra.mxu0 %v1963
    %1999 = vmatprep.subr.bf16.mxu0 %v1962
    %2000 = vmatpush1.bf16.msra.mxu0 %v1961
    %2001 = vmatprep.subr.bf16.mxu0 %v1960
    %2002 = vmatpush1.bf16.msra.mxu0 %v1959
    %2003 = vmatprep.subr.bf16.mxu0 %v1958
    %2004 = vmatpush1.bf16.msra.mxu0 %v1957
    %2005 = vmatprep.subr.bf16.mxu0 0
    %2006 = vmatpush2.bf16.msra.mxu0 0
    %2007 = vmatprep.subr.bf16.mxu0 0
    %2008 = vmatpush2.bf16.msra.mxu0 0
    %2009 = vmatprep.subr.bf16.mxu0 0
    %2010 = vmatpush2.bf16.msra.mxu0 0
    %2011 = vmatprep.subr.bf16.mxu0 0
    %2012 = vmatpush2.bf16.msra.mxu0 0
    %2013 = vmatprep.subr.bf16.mxu0 0
    %2014 = vmatpush2.bf16.msra.mxu0 0
    %2015 = vmatprep.subr.bf16.mxu0 0
    %2016 = vmatpush2.bf16.msra.mxu0 0
    %2017 = vmatprep.subr.bf16.mxu0 0
    %2018 = vmatpush2.bf16.msra.mxu0 0
    %2019 = vmatprep.subr.bf16.mxu0 0
    %2020 = vmatpush2.bf16.msra.mxu0 0
    %2021 = vmatprep.mubr.bf16.mxu0 0
    %2022 = vmatmul.mubr.bf16.gmra.mxu0 %v1858
    %v2023 = vpop.f32.mrf.mxu0
    %v2024 = vadd.f32 %v1902, %v2023
    %v2025 = vpop.f32.mrf.mxu0
    %v2026 = vadd.f32 %v1906, %v2025
    %v2027 = vpop.f32.mrf.mxu0
    %v2028 = vadd.f32 %v1902, %v2027
    %v2029 = vpop.f32.mrf.mxu0
    %v2030 = vadd.f32 %v1906, %v2029
    %2031 = vmatprep.mubr.bf16.mxu0 0
    %2032 = vmatmul.mubr.bf16.gmra.mxu0 %v1861
    %v2033 = vpop.f32.mrf.mxu0
    %v2034 = vadd.f32 %v1902, %v2033
    %v2035 = vpop.f32.mrf.mxu0
    %v2036 = vadd.f32 %v1906, %v2035
    %v2037 = vpop.f32.mrf.mxu0
    %v2038 = vadd.f32 %v1902, %v2037
    %v2039 = vpop.f32.mrf.mxu0
    %v2040 = vadd.f32 %v1906, %v2039
    %2041 = vmatprep.mubr.bf16.mxu0 0
    %2042 = vmatmul.mubr.bf16.gmra.mxu0 %v1864
    %v2043 = vpop.f32.mrf.mxu0
    %v2044 = vadd.f32 %v1902, %v2043
    %v2045 = vpop.f32.mrf.mxu0
    %v2046 = vadd.f32 %v1906, %v2045
    %v2047 = vpop.f32.mrf.mxu0
    %v2048 = vadd.f32 %v1902, %v2047
    %v2049 = vpop.f32.mrf.mxu0
    %v2050 = vadd.f32 %v1906, %v2049
    %2051 = vmatprep.mubr.bf16.mxu0 0
    %2052 = vmatmul.mubr.bf16.gmra.mxu0 %v1867
    %v2053 = vpop.f32.mrf.mxu0
    %v2054 = vadd.f32 %v1902, %v2053
    %v2055 = vpop.f32.mrf.mxu0
    %v2056 = vadd.f32 %v1906, %v2055
    %v2057 = vpop.f32.mrf.mxu0
    %v2058 = vadd.f32 %v1902, %v2057
    %v2059 = vpop.f32.mrf.mxu0
    %v2060 = vadd.f32 %v1906, %v2059
    %2061 = vmatprep.mubr.bf16.mxu0 0
    %2062 = vmatmul.mubr.bf16.gmra.mxu0 %v1870
    %v2063 = vpop.f32.mrf.mxu0
    %v2064 = vadd.f32 %v1902, %v2063
    %v2065 = vpop.f32.mrf.mxu0
    %v2066 = vadd.f32 %v1906, %v2065
    %v2067 = vpop.f32.mrf.mxu0
    %v2068 = vadd.f32 %v1902, %v2067
    %v2069 = vpop.f32.mrf.mxu0
    %v2070 = vadd.f32 %v1906, %v2069
    %2071 = vmatprep.mubr.bf16.mxu0 0
    %2072 = vmatmul.mubr.bf16.gmra.mxu0 %v1873
    %v2073 = vpop.f32.mrf.mxu0
    %v2074 = vadd.f32 %v1902, %v2073
    %v2075 = vpop.f32.mrf.mxu0
    %v2076 = vadd.f32 %v1906, %v2075
    %v2077 = vpop.f32.mrf.mxu0
    %v2078 = vadd.f32 %v1902, %v2077
    %v2079 = vpop.f32.mrf.mxu0
    %v2080 = vadd.f32 %v1906, %v2079
    %2081 = vmatprep.mubr.bf16.mxu0 0
    %2082 = vmatmul.mubr.bf16.gmra.mxu0 %v1876
    %v2083 = vpop.f32.mrf.mxu0
    %v2084 = vadd.f32 %v1902, %v2083
    %v2085 = vpop.f32.mrf.mxu0
    %v2086 = vadd.f32 %v1906, %v2085
    %v2087 = vpop.f32.mrf.mxu0
    %v2088 = vadd.f32 %v1902, %v2087
    %v2089 = vpop.f32.mrf.mxu0
    %v2090 = vadd.f32 %v1906, %v2089
    %2091 = vmatprep.mubr.bf16.mxu0 0
    %2092 = vmatmul.mubr.bf16.gmra.mxu0 %v1879
    %v2093 = vpop.f32.mrf.mxu0
    %v2094 = vadd.f32 %v1902, %v2093
    %v2095 = vpop.f32.mrf.mxu0
    %v2096 = vadd.f32 %v1906, %v2095
    %v2097 = vpop.f32.mrf.mxu0
    %v2098 = vadd.f32 %v1902, %v2097
    %v2099 = vpop.f32.mrf.mxu0
    %v2100 = vadd.f32 %v1906, %v2099
    %2101 = vdwg.mxu0
    %v2102 = vxor.u32 %v2026, 2147483648
    %v2103 = vxor.u32 %v2030, 2147483648
    %v2104 = vxor.u32 %v2036, 2147483648
    %v2105 = vxor.u32 %v2040, 2147483648
    %v2106 = vxor.u32 %v2046, 2147483648
    %v2107 = vxor.u32 %v2050, 2147483648
    %v2108 = vxor.u32 %v2056, 2147483648
    %v2109 = vxor.u32 %v2060, 2147483648
    %v2110 = vxor.u32 %v2066, 2147483648
    %v2111 = vxor.u32 %v2070, 2147483648
    %v2112 = vxor.u32 %v2076, 2147483648
    %v2113 = vxor.u32 %v2080, 2147483648
    %v2114 = vxor.u32 %v2086, 2147483648
    %v2115 = vxor.u32 %v2090, 2147483648
    %v2116 = vxor.u32 %v2096, 2147483648
    %v2117 = vxor.u32 %v2100, 2147483648
    %v2118 = vmul.f32 %v2102, 1.442695
    %v2119 = vpow.pop %v2118
    %v2120 = vmul.f32 %v2103, 1.442695
    %v2121 = vpow.pop %v2120
    %v2122 = vmul.f32 %v2104, 1.442695
    %v2123 = vpow.pop %v2122
    %v2124 = vmul.f32 %v2105, 1.442695
    %v2125 = vpow.pop %v2124
    %v2126 = vmul.f32 %v2106, 1.442695
    %v2127 = vpow.pop %v2126
    %v2128 = vmul.f32 %v2107, 1.442695
    %v2129 = vpow.pop %v2128
    %v2130 = vmul.f32 %v2108, 1.442695
    %v2131 = vpow.pop %v2130
    %v2132 = vmul.f32 %v2109, 1.442695
    %v2133 = vpow.pop %v2132
    %v2134 = vmul.f32 %v2110, 1.442695
    %v2135 = vpow.pop %v2134
    %v2136 = vmul.f32 %v2111, 1.442695
    %v2137 = vpow.pop %v2136
    %v2138 = vmul.f32 %v2112, 1.442695
    %v2139 = vpow.pop %v2138
    %v2140 = vmul.f32 %v2113, 1.442695
    %v2141 = vpow.pop %v2140
    %v2142 = vmul.f32 %v2114, 1.442695
    %v2143 = vpow.pop %v2142
    %v2144 = vmul.f32 %v2115, 1.442695
    %v2145 = vpow.pop %v2144
    %v2146 = vmul.f32 %v2116, 1.442695
    %v2147 = vpow.pop %v2146
    %v2148 = vmul.f32 %v2117, 1.442695
    %v2149 = vpow.pop %v2148
    %v2150 = vadd.f32 %v2119, 1.0
    %v2151 = vadd.f32 %v2121, 1.0
    %v2152 = vadd.f32 %v2123, 1.0
    %v2153 = vadd.f32 %v2125, 1.0
    %v2154 = vadd.f32 %v2127, 1.0
    %v2155 = vadd.f32 %v2129, 1.0
    %v2156 = vadd.f32 %v2131, 1.0
    %v2157 = vadd.f32 %v2133, 1.0
    %v2158 = vadd.f32 %v2135, 1.0
    %v2159 = vadd.f32 %v2137, 1.0
    %v2160 = vadd.f32 %v2139, 1.0
    %v2161 = vadd.f32 %v2141, 1.0
    %v2162 = vadd.f32 %v2143, 1.0
    %v2163 = vadd.f32 %v2145, 1.0
    %v2164 = vadd.f32 %v2147, 1.0
    %v2165 = vadd.f32 %v2149, 1.0
    %v2166 = vrcp.pop %v2150
    %v2167 = vmul.f32 1.0, %v2166
    %v2168 = vrcp.pop %v2151
    %v2169 = vmul.f32 1.0, %v2168
    %v2170 = vrcp.pop %v2152
    %v2171 = vmul.f32 1.0, %v2170
    %v2172 = vrcp.pop %v2153
    %v2173 = vmul.f32 1.0, %v2172
    %v2174 = vrcp.pop %v2154
    %v2175 = vmul.f32 1.0, %v2174
    %v2176 = vrcp.pop %v2155
    %v2177 = vmul.f32 1.0, %v2176
    %v2178 = vrcp.pop %v2156
    %v2179 = vmul.f32 1.0, %v2178
    %v2180 = vrcp.pop %v2157
    %v2181 = vmul.f32 1.0, %v2180
    %v2182 = vrcp.pop %v2158
    %v2183 = vmul.f32 1.0, %v2182
    %v2184 = vrcp.pop %v2159
    %v2185 = vmul.f32 1.0, %v2184
    %v2186 = vrcp.pop %v2160
    %v2187 = vmul.f32 1.0, %v2186
    %v2188 = vrcp.pop %v2161
    %v2189 = vmul.f32 1.0, %v2188
    %v2190 = vrcp.pop %v2162
    %v2191 = vmul.f32 1.0, %v2190
    %v2192 = vrcp.pop %v2163
    %v2193 = vmul.f32 1.0, %v2192
    %v2194 = vrcp.pop %v2164
    %v2195 = vmul.f32 1.0, %v2194
    %v2196 = vrcp.pop %v2165
    %v2197 = vmul.f32 1.0, %v2196
    %v2198 = vmul.f32 %v2024, %v2167
    %v2199 = vmul.f32 %v2028, %v2169
    %v2200 = vmul.f32 %v2034, %v2171
    %v2201 = vmul.f32 %v2038, %v2173
    %v2202 = vmul.f32 %v2044, %v2175
    %v2203 = vmul.f32 %v2048, %v2177
    %v2204 = vmul.f32 %v2054, %v2179
    %v2205 = vmul.f32 %v2058, %v2181
    %v2206 = vmul.f32 %v2064, %v2183
    %v2207 = vmul.f32 %v2068, %v2185
    %v2208 = vmul.f32 %v2074, %v2187
    %v2209 = vmul.f32 %v2078, %v2189
    %v2210 = vmul.f32 %v2084, %v2191
    %v2211 = vmul.f32 %v2088, %v2193
    %v2212 = vmul.f32 %v2094, %v2195
    %v2213 = vmul.f32 %v2098, %v2197
    %v2214 = vld [vmem:[#allocation8] sm:$0xff]
    %v2215 = vld [vmem:[#allocation8 + $0x8] sm:$0xff]
    %v2216 = vadd.f32 %v2198, %v2214
    %v2217 = vadd.f32 %v2199, %v2215
    %v2218 = vadd.f32 %v2200, %v2214
    %v2219 = vadd.f32 %v2201, %v2215
    %v2220 = vadd.f32 %v2202, %v2214
    %v2221 = vadd.f32 %v2203, %v2215
    %v2222 = vadd.f32 %v2204, %v2214
    %v2223 = vadd.f32 %v2205, %v2215
    %v2224 = vadd.f32 %v2206, %v2214
    %v2225 = vadd.f32 %v2207, %v2215
    %v2226 = vadd.f32 %v2208, %v2214
    %v2227 = vadd.f32 %v2209, %v2215
    %v2228 = vadd.f32 %v2210, %v2214
    %v2229 = vadd.f32 %v2211, %v2215
    %v2230 = vadd.f32 %v2212, %v2214
    %v2231 = vadd.f32 %v2213, %v2215
    %v2232 = vmax.f32 %v2216, %v2217
    %v2233 = vrot.slane %v2232, 4
    %v2234 = vmax.f32 %v2232, %v2233
    %v2235 = vrot.slane %v2234, 2
    %v2236 = vmax.f32 %v2234, %v2235
    %v2237 = vrot.slane %v2236, 1
    %v2238 = vmax.f32 %v2236, %v2237
    %v2239 = vmax.f32 %v2218, %v2219
    %v2240 = vrot.slane %v2239, 4
    %v2241 = vmax.f32 %v2239, %v2240
    %v2242 = vrot.slane %v2241, 2
    %v2243 = vmax.f32 %v2241, %v2242
    %v2244 = vrot.slane %v2243, 1
    %v2245 = vmax.f32 %v2243, %v2244
    %v2246 = vmax.f32 %v2220, %v2221
    %v2247 = vrot.slane %v2246, 4
    %v2248 = vmax.f32 %v2246, %v2247
    %v2249 = vrot.slane %v2248, 2
    %v2250 = vmax.f32 %v2248, %v2249
    %v2251 = vrot.slane %v2250, 1
    %v2252 = vmax.f32 %v2250, %v2251
    %v2253 = vmax.f32 %v2222, %v2223
    %v2254 = vrot.slane %v2253, 4
    %v2255 = vmax.f32 %v2253, %v2254
    %v2256 = vrot.slane %v2255, 2
    %v2257 = vmax.f32 %v2255, %v2256
    %v2258 = vrot.slane %v2257, 1
    %v2259 = vmax.f32 %v2257, %v2258
    %v2260 = vmax.f32 %v2224, %v2225
    %v2261 = vrot.slane %v2260, 4
    %v2262 = vmax.f32 %v2260, %v2261
    %v2263 = vrot.slane %v2262, 2
    %v2264 = vmax.f32 %v2262, %v2263
    %v2265 = vrot.slane %v2264, 1
    %v2266 = vmax.f32 %v2264, %v2265
    %v2267 = vmax.f32 %v2226, %v2227
    %v2268 = vrot.slane %v2267, 4
    %v2269 = vmax.f32 %v2267, %v2268
    %v2270 = vrot.slane %v2269, 2
    %v2271 = vmax.f32 %v2269, %v2270
    %v2272 = vrot.slane %v2271, 1
    %v2273 = vmax.f32 %v2271, %v2272
    %v2274 = vmax.f32 %v2228, %v2229
    %v2275 = vrot.slane %v2274, 4
    %v2276 = vmax.f32 %v2274, %v2275
    %v2277 = vrot.slane %v2276, 2
    %v2278 = vmax.f32 %v2276, %v2277
    %v2279 = vrot.slane %v2278, 1
    %v2280 = vmax.f32 %v2278, %v2279
    %v2281 = vmax.f32 %v2230, %v2231
    %v2282 = vrot.slane %v2281, 4
    %v2283 = vmax.f32 %v2281, %v2282
    %v2284 = vrot.slane %v2283, 2
    %v2285 = vmax.f32 %v2283, %v2284
    %v2286 = vrot.slane %v2285, 1
    %v2287 = vmax.f32 %v2285, %v2286
    %2296 = vrot.lane.b32.xlu0 %v2238, 64
    %v2297 = vpop.permute.xlu0 %2296
    %2298 = vrot.lane.b32.xlu0 %v2245, 64
    %v2299 = vpop.permute.xlu0 %2298
    %2300 = vrot.lane.b32.xlu0 %v2252, 64
    %v2301 = vpop.permute.xlu0 %2300
    %2302 = vrot.lane.b32.xlu0 %v2259, 64
    %v2303 = vpop.permute.xlu0 %2302
    %2304 = vrot.lane.b32.xlu0 %v2266, 64
    %v2305 = vpop.permute.xlu0 %2304
    %2306 = vrot.lane.b32.xlu0 %v2273, 64
    %v2307 = vpop.permute.xlu0 %2306
    %2308 = vrot.lane.b32.xlu0 %v2280, 64
    %v2309 = vpop.permute.xlu0 %2308
    %2310 = vrot.lane.b32.xlu0 %v2287, 64
    %v2311 = vpop.permute.xlu0 %2310
    %v2320 = vmax.f32 %v2238, %v2297
    %v2321 = vmax.f32 %v2245, %v2299
    %v2322 = vmax.f32 %v2252, %v2301
    %v2323 = vmax.f32 %v2259, %v2303
    %v2324 = vmax.f32 %v2266, %v2305
    %v2325 = vmax.f32 %v2273, %v2307
    %v2326 = vmax.f32 %v2280, %v2309
    %v2327 = vmax.f32 %v2287, %v2311
    %v2328 = vpack.c.bf16 %v2320, %v2320
    %v2329 = vpack.c.bf16 %v2321, %v2321
    %v2330 = vpack.c.bf16 %v2322, %v2322
    %v2331 = vpack.c.bf16 %v2323, %v2323
    %v2332 = vpack.c.bf16 %v2324, %v2324
    %v2333 = vpack.c.bf16 %v2325, %v2325
    %v2334 = vpack.c.bf16 %v2326, %v2326
    %v2335 = vpack.c.bf16 %v2327, %v2327
    %v2336 = vld [vmem:[#allocation9] sm:$0xf]
    %v2337 = vld [vmem:[#allocation9 + $0x4] sm:$0xf]
    %v2338 = vld [vmem:[#allocation9 + $0x8] sm:$0xf]
    %v2339 = vld [vmem:[#allocation9 + $0xc] sm:$0xf]
    %v2340 = vld [vmem:[#allocation9 + $0x10] sm:$0xf]
    %v2341 = vld [vmem:[#allocation9 + $0x14] sm:$0xf]
    %v2342 = vld [vmem:[#allocation9 + $0x18] sm:$0xf]
    %v2343 = vld [vmem:[#allocation9 + $0x1c] sm:$0xf]
    %v2344 = vld [vmem:[%s5] sm:$0x1]
    %v2346 = vlaneseq
    %v2347 = vshrl.u32 %v2346, 7
    %v2348 = vsub.s32 0, %v2347
    %v2349 = vrot.slane %v2344, %v2348
    %v2359 = vunpack.c.l.b16 %v2328
    %v2360 = vunpack.c.l.b16 %v2329
    %v2361 = vunpack.c.l.b16 %v2330
    %v2362 = vunpack.c.l.b16 %v2331
    %v2363 = vunpack.c.l.b16 %v2332
    %v2364 = vunpack.c.l.b16 %v2333
    %v2365 = vunpack.c.l.b16 %v2334
    %v2366 = vunpack.c.l.b16 %v2335
    %v2367 = vrot.slane %v2360, 7
    %vm2368 = vcmask 1041409
    %v2369 = vsel %vm2368, %v2367, %v2359
    %v2370 = vrot.slane %v2361, 6
    %vm2371 = vcmask 1042434
    %v2372 = vsel %vm2371, %v2370, %v2369
    %v2373 = vrot.slane %v2362, 5
    %vm2374 = vcmask 1043459
    %v2375 = vsel %vm2374, %v2373, %v2372
    %v2376 = vrot.slane %v2363, 4
    %vm2377 = vcmask 1044484
    %v2378 = vsel %vm2377, %v2376, %v2375
    %v2379 = vrot.slane %v2364, 3
    %vm2380 = vcmask 1045509
    %v2381 = vsel %vm2380, %v2379, %v2378
    %v2382 = vrot.slane %v2365, 2
    %vm2383 = vcmask 1046534
    %v2384 = vsel %vm2383, %v2382, %v2381
    %v2385 = vrot.slane %v2366, 1
    %vm2386 = vcmask 1047559
    %v2387 = vsel %vm2386, %v2385, %v2384
    %v2388 = vpack.c.b16 %v2387, %v2387
    %v2397 = vunpack.c.l.b16 %v2336
    %v2398 = vunpack.c.l.b16 %v2337
    %v2399 = vunpack.c.l.b16 %v2338
    %v2400 = vunpack.c.l.b16 %v2339
    %v2401 = vunpack.c.l.b16 %v2340
    %v2402 = vunpack.c.l.b16 %v2341
    %v2403 = vunpack.c.l.b16 %v2342
    %v2404 = vunpack.c.l.b16 %v2343
    %v2405 = vpack.c.b16 %v2398, %v2397
    %v2406 = vpack.c.b16 %v2400, %v2399
    %v2407 = vpack.c.b16 %v2402, %v2401
    %v2408 = vpack.c.b16 %v2404, %v2403
    %v2414 = vsel %vm1805, %v2388, 0
    %2416 = vmatprep.subr.bf16.mxu0 0
    %2417 = vmatpush1.bf16.msra.mxu0 0
    %2418 = vmatprep.subr.bf16.mxu0 0
    %2419 = vmatpush1.bf16.msra.mxu0 0
    %2420 = vmatprep.subr.bf16.mxu0 0
    %2421 = vmatpush1.bf16.msra.mxu0 0
    %2422 = vmatprep.subr.bf16.mxu0 0
    %2423 = vmatpush1.bf16.msra.mxu0 0
    %2424 = vmatprep.subr.bf16.mxu0 0
    %2425 = vmatpush1.bf16.msra.mxu0 %v2408
    %2426 = vmatprep.subr.bf16.mxu0 0
    %2427 = vmatpush1.bf16.msra.mxu0 %v2407
    %2428 = vmatprep.subr.bf16.mxu0 0
    %2429 = vmatpush1.bf16.msra.mxu0 %v2406
    %2430 = vmatprep.subr.bf16.mxu0 0
    %2431 = vmatpush1.bf16.msra.mxu0 %v2405
    %2432 = vmatprep.subr.bf16.mxu0 0
    %2433 = vmatpush2.bf16.msra.mxu0 0
    %2434 = vmatprep.subr.bf16.mxu0 0
    %2435 = vmatpush2.bf16.msra.mxu0 0
    %2436 = vmatprep.subr.bf16.mxu0 0
    %2437 = vmatpush2.bf16.msra.mxu0 0
    %2438 = vmatprep.subr.bf16.mxu0 0
    %2439 = vmatpush2.bf16.msra.mxu0 0
    %2440 = vmatprep.subr.bf16.mxu0 0
    %2441 = vmatpush2.bf16.msra.mxu0 0
    %2442 = vmatprep.subr.bf16.mxu0 0
    %2443 = vmatpush2.bf16.msra.mxu0 0
    %2444 = vmatprep.subr.bf16.mxu0 0
    %2445 = vmatpush2.bf16.msra.mxu0 0
    %2446 = vmatprep.subr.bf16.mxu0 0
    %2447 = vmatpush2.bf16.msra.mxu0 0
    %2448 = vmatprep.mubr.bf16.mxu0 0
    %2449 = vmatmul.mubr.bf16.gmra.mxu0 %v2414
    %v2450 = vpop.f32.mrf.mxu0
    %v2451 = vadd.f32 %v2349, %v2450
    %v2452 = vpop.f32.mrf.mxu0
    %v2453 = vpop.f32.mrf.mxu0
    %v2454 = vpop.f32.mrf.mxu0
    %2455 = vdwg.mxu0
    %v2456 = vmax.f32 %v2451, 0.0
    %v2457 = vpack.c.bf16 %v2456, %v2456
    %v2458 = vld [vmem:[#allocation11] sm:$0xf]
    %v2459 = vld [vmem:[#allocation11 + $0x4] sm:$0xf]
    %v2460 = vld [vmem:[#allocation11 + $0x8] sm:$0xf]
    %v2461 = vld [vmem:[#allocation11 + $0xc] sm:$0xf]
    %v2462 = vld [vmem:[#allocation11 + $0x10] sm:$0xf]
    %v2463 = vld [vmem:[#allocation11 + $0x14] sm:$0xf]
    %v2464 = vld [vmem:[#allocation11 + $0x18] sm:$0xf]
    %v2465 = vld [vmem:[#allocation11 + $0x1c] sm:$0xf]
    %v2466 = vld [vmem:[#allocation11 + $0x20] sm:$0xf]
    %v2467 = vld [vmem:[#allocation11 + $0x24] sm:$0xf]
    %v2468 = vld [vmem:[#allocation11 + $0x28] sm:$0xf]
    %v2469 = vld [vmem:[#allocation11 + $0x2c] sm:$0xf]
    %v2470 = vld [vmem:[#allocation11 + $0x30] sm:$0xf]
    %v2471 = vld [vmem:[#allocation11 + $0x34] sm:$0xf]
    %v2472 = vld [vmem:[#allocation11 + $0x38] sm:$0xf]
    %v2473 = vld [vmem:[#allocation11 + $0x3c] sm:$0xf]
    %v2474 = vld [vmem:[%s7] sm:$0x1]
    %v2476 = vlaneseq
    %v2477 = vshrl.u32 %v2476, 7
    %v2478 = vsub.s32 0, %v2477
    %v2479 = vrot.slane %v2474, %v2478
    %v2497 = vunpack.c.l.b16 %v2458
    %v2498 = vunpack.c.l.b16 %v2459
    %v2499 = vunpack.c.l.b16 %v2460
    %v2500 = vunpack.c.l.b16 %v2461
    %v2501 = vunpack.c.l.b16 %v2462
    %v2502 = vunpack.c.l.b16 %v2463
    %v2503 = vunpack.c.l.b16 %v2464
    %v2504 = vunpack.c.l.b16 %v2465
    %v2505 = vunpack.c.l.b16 %v2466
    %v2506 = vunpack.c.l.b16 %v2467
    %v2507 = vunpack.c.l.b16 %v2468
    %v2508 = vunpack.c.l.b16 %v2469
    %v2509 = vunpack.c.l.b16 %v2470
    %v2510 = vunpack.c.l.b16 %v2471
    %v2511 = vunpack.c.l.b16 %v2472
    %v2512 = vunpack.c.l.b16 %v2473
    %v2513 = vpack.c.b16 %v2498, %v2497
    %v2514 = vpack.c.b16 %v2500, %v2499
    %v2515 = vpack.c.b16 %v2502, %v2501
    %v2516 = vpack.c.b16 %v2504, %v2503
    %v2517 = vpack.c.b16 %v2506, %v2505
    %v2518 = vpack.c.b16 %v2508, %v2507
    %v2519 = vpack.c.b16 %v2510, %v2509
    %v2520 = vpack.c.b16 %v2512, %v2511
    %2529 = vmatprep.subr.bf16.mxu0 0
    %2530 = vmatpush1.bf16.msra.mxu0 %v2520
    %2531 = vmatprep.subr.bf16.mxu0 0
    %2532 = vmatpush1.bf16.msra.mxu0 %v2519
    %2533 = vmatprep.subr.bf16.mxu0 0
    %2534 = vmatpush1.bf16.msra.mxu0 %v2518
    %2535 = vmatprep.subr.bf16.mxu0 0
    %2536 = vmatpush1.bf16.msra.mxu0 %v2517
    %2537 = vmatprep.subr.bf16.mxu0 0
    %2538 = vmatpush1.bf16.msra.mxu0 %v2516
    %2539 = vmatprep.subr.bf16.mxu0 0
    %2540 = vmatpush1.bf16.msra.mxu0 %v2515
    %2541 = vmatprep.subr.bf16.mxu0 0
    %2542 = vmatpush1.bf16.msra.mxu0 %v2514
    %2543 = vmatprep.subr.bf16.mxu0 0
    %2544 = vmatpush1.bf16.msra.mxu0 %v2513
    %2545 = vmatprep.subr.bf16.mxu0 0
    %2546 = vmatpush2.bf16.msra.mxu0 0
    %2547 = vmatprep.subr.bf16.mxu0 0
    %2548 = vmatpush2.bf16.msra.mxu0 0
    %2549 = vmatprep.subr.bf16.mxu0 0
    %2550 = vmatpush2.bf16.msra.mxu0 0
    %2551 = vmatprep.subr.bf16.mxu0 0
    %2552 = vmatpush2.bf16.msra.mxu0 0
    %2553 = vmatprep.subr.bf16.mxu0 0
    %2554 = vmatpush2.bf16.msra.mxu0 0
    %2555 = vmatprep.subr.bf16.mxu0 0
    %2556 = vmatpush2.bf16.msra.mxu0 0
    %2557 = vmatprep.subr.bf16.mxu0 0
    %2558 = vmatpush2.bf16.msra.mxu0 0
    %2559 = vmatprep.subr.bf16.mxu0 0
    %2560 = vmatpush2.bf16.msra.mxu0 0
    %2561 = vmatprep.mubr.bf16.mxu0 0
    %2562 = vmatmul.mubr.bf16.gmra.mxu0 %v2457
    %v2563 = vpop.f32.mrf.mxu0
    %v2564 = vadd.f32 %v2479, %v2563
    %v2565 = vpop.f32.mrf.mxu0
    %v2566 = vpop.f32.mrf.mxu0
    %v2567 = vpop.f32.mrf.mxu0
    %2568 = vdwg.mxu0
    %2569 = vst [vmem:[#allocation12] sm:$0xff] %v2564
    // Predicated region
    $region54: #{tpu_custom_call.1} parent=1 // pred_check
      _
    $region55: #{tpu_custom_call.1} parent=1 // pred_check_branch
      %2571 = sbr.rel (0) target = $region57
    $region56: #{tpu_custom_call.1} parent=1 // pred_region
      %s2573 = ssub.s32 128, 128
      %2574 = vsyncadd [#allocation5], %s2573
      %s2576 = sshll.u32 [#allocation12], 4
      %s2577 = int_to_ptr.vmem [resolvable:$true] %s2576
      %2579 = dma.vmem_to_hbm [thread:$0]  %s2577, 128, %s8, [#allocation5]
    $region57: #{tpu_custom_call.1} parent=1 // pred_fallthru
      _
    // Predicated region
    $region58: #{tpu_custom_call.1} parent=1 // pred_check
      _
    $region59: #{tpu_custom_call.1} parent=1 // pred_check_branch
      %2581 = sbr.rel (0) target = $region61
    $region60: #{tpu_custom_call.1} parent=1 // pred_region
      %2582 = dma.done [#allocation5], 128
    $region61: #{tpu_custom_call.1} parent=1 // pred_fallthru
      _
    %2583 = vsyncpa [#allocation4], 1
    %2584 = vsyncpa [#allocation7], 1
    %2585 = vsyncpa [#allocation10], 1
    %2586 = vsyncpa [#allocation5], 1

</llo_original>
